<compile_context>
chip_gen: v6e
topology: v6e:2x2x1
jax: 0.10.0
libtpu: 0.0.40
codegen_flags: <defaults>
</compile_context>

<pallas_src>
import functools
import numpy as np
import jax
import jax.numpy as jnp
from jax import lax
from jax.experimental import pallas as pl
from jax.experimental.pallas import tpu as pltpu


def _softplus(x):
    # Matches torch.nn.Softplus(beta=1, threshold=20)
    return jnp.where(x > 20.0, x, jnp.log1p(jnp.exp(jnp.minimum(x, 20.0))))


def _round_up(x, m):
    return ((x + m - 1) // m) * m


def _compute_meta(rois, spatial_scale, data_h, data_w, rp):
    """Per-roi metadata (rp, 8) f32: [batch, hstart, hend, wstart, wend, 1/count, keep, 0]."""
    num = rois.shape[0]
    batch = rois[:, 0].astype(jnp.int32).astype(jnp.float32)
    coords = jnp.round(rois[:, 1:5] * spatial_scale).astype(jnp.int32)
    xs, ys, xe, ye = coords[:, 0], coords[:, 1], coords[:, 2], coords[:, 3]
    roi_w = jnp.maximum(xe - xs + 1, 1)
    roi_h = jnp.maximum(ye - ys + 1, 1)
    # ph = pw = 0: floor(0)=0, ceil(bin)=roi_{h,w}; then clamp to the feature map.
    hstart = jnp.clip(ys, 0, data_h)
    hend = jnp.clip(roi_h + ys, 0, data_h)
    wstart = jnp.clip(xs, 0, data_w)
    wend = jnp.clip(roi_w + xs, 0, data_w)
    count = ((hend - hstart) * (wend - wstart)).astype(jnp.float32)
    keep = ((hend > hstart) & (wend > wstart)).astype(jnp.float32)
    invcnt = 1.0 / jnp.maximum(count, 1.0)
    meta = jnp.stack(
        [batch,
         hstart.astype(jnp.float32), hend.astype(jnp.float32),
         wstart.astype(jnp.float32), wend.astype(jnp.float32),
         invcnt, keep, jnp.zeros_like(invcnt)], axis=1)
    if rp > num:
        # padding ROIs: batch=-1 (never matches) and keep=0 -> contribute nothing
        pad = jnp.zeros((rp - num, 8), jnp.float32).at[:, 0].set(-1.0)
        meta = jnp.concatenate([meta, pad], axis=0)
    return meta


def _carn_kernel(meta_ref, lsel_ref, coords_ref, feat_ref,
                 w1a_ref, w1b_ref, b1_ref, w2_ref, b2_ref,
                 out_ref, mask_ref, rpool_ref, gsum_ref, *, inv_hw, bpad):
    t = pl.program_id(0)                       # spatial tile index (outer)
    b = pl.program_id(1)                       # image index (inner)
    is_first = jnp.logical_and(t == 0, b == 0)
    is_last = jnp.logical_and(t == pl.num_programs(0) - 1,
                              b == pl.num_programs(1) - 1)

    @pl.when(is_first)
    def _init():
        rpool_ref[...] = jnp.zeros_like(rpool_ref)
        gsum_ref[...] = jnp.zeros_like(gsum_ref)

    # Batch-invariant 0/1 ROI-window mask for this spatial tile: built once per
    # tile (b == 0), cached in VMEM and reused for every image.
    @pl.when(b == 0)
    def _build_mask():
        meta = meta_ref[...]                                   # (Rp, 8) f32
        rp_m, thw = mask_ref.shape
        hpos = jnp.broadcast_to(coords_ref[0:1, :], (rp_m, thw))
        wpos = jnp.broadcast_to(coords_ref[1:2, :], (rp_m, thw))
        inside = ((hpos >= meta[:, 1:2]) & (hpos < meta[:, 2:3]) &
                  (wpos >= meta[:, 3:4]) & (wpos < meta[:, 4:5]))
        mask_ref[...] = jnp.where(inside, 1.0, 0.0).astype(mask_ref.dtype)

    feat = feat_ref[0]                                          # (C, THW), bf16/f32

    # All ROI window sums for this (tile, image) in one MXU matmul (f32 accumulate),
    # contracting the spatial axis of both operands (no transpose needed).
    sums = lax.dot_general(feat, mask_ref[...],
                           dimension_numbers=(((1,), (1,)), ((), ())),
                           preferred_element_type=jnp.float32)  # (C, Rp)
    batch_row = lsel_ref[0:1, :].astype(jnp.int32)              # (1, Rp)
    sel = jnp.where(batch_row == b, lsel_ref[1:2, :], 0.0)      # keep * batch-match
    rpool_ref[...] += sel * sums

    # Per-image global (context) sum: XLU lane reduction + one-hot scatter into
    # a tiny (C, B_pad) accumulator (no (Rp, C) broadcast per step).
    colsum = jnp.sum(feat.astype(jnp.float32), axis=1, keepdims=True)   # (C, 1)
    onehot_b = (lax.broadcasted_iota(jnp.int32, (1, bpad), 1) == b).astype(jnp.float32)
    gsum_ref[...] += colsum * onehot_b

    # Batched 2-layer MLP over all ROIs, once, at the final grid step.
    @pl.when(is_last)
    def _finalize():
        rp_o = out_ref.shape[1]
        keep = lsel_ref[1:2, :]                                 # (1, Rp)
        invcnt = lsel_ref[2:3, :]                               # (1, Rp)
        batch_i = lsel_ref[0:1, :].astype(jnp.int32)            # (1, Rp)
        # (B_pad, Rp) selector: one-hot(batch) * keep / (H*W)
        iota_b = lax.broadcasted_iota(jnp.int32, (bpad, rp_o), 0)
        sel_mat = jnp.where(iota_b == batch_i, keep * inv_hw, 0.0)
        gpool = jnp.dot(gsum_ref[...], sel_mat,
                        preferred_element_type=jnp.float32)     # (C, Rp) context means
        rpool = rpool_ref[...] * invcnt                         # (C, Rp) region means
        h1 = (jnp.dot(w1a_ref[...], rpool, preferred_element_type=jnp.float32)
              + jnp.dot(w1b_ref[...], gpool, preferred_element_type=jnp.float32)
              + b1_ref[...])
        h1 = _softplus(h1)                                      # (hidden, Rp)
        o = jnp.dot(w2_ref[...], h1, preferred_element_type=jnp.float32) + b2_ref[...]
        out_ref[...] = _softplus(o)                             # lane-dense (1, Rp) store


def context_aware_regional_attention(features_nchw, rois, w1, b1, w2, b2,
                                     spatial_scale, hw_tile=None,
                                     feat_dtype=jnp.bfloat16):
    """features_nchw: (B, C, H, W); rois: (R, 5) [batch, x1, y1, x2, y2] -> (1, R)."""
    B, C, H, W = features_nchw.shape
    num_rois = rois.shape[0]
    hidden = w1.shape[1]
    hw = H * W
    rp = _round_up(max(num_rois, 1), 128)          # ROIs live on the lane axis
    bpad = _round_up(max(B, 1), 128)               # per-image accumulator lanes

    feat_bytes = 2 if feat_dtype == jnp.bfloat16 else 4
    mask_bytes = feat_bytes

    # Generation-aware VMEM budgeting (v5e/v6e: 128 MiB physical; v7x: 64 MiB).
    cap = 64 * 1024 * 1024
    try:
        cap = int(getattr(pltpu.get_tpu_info(), "vmem_capacity_bytes", cap))
    except Exception:
        pass

    hwp_full = _round_up(hw, 128)
    # True (lane-dense, hw-minor) bytes per spatial position held in VMEM:
    #   double-buffered feature tile + double-buffered coords (sublane-padded to 8)
    #   + cached ROI mask.
    per_hw_bytes = 2 * C * feat_bytes + 2 * 8 * 4 + rp * mask_bytes
    if hw_tile is None:
        tile_budget = (16 if cap < 100 * (1 << 20) else 40) * (1 << 20)
        rows = max(128, (tile_budget // per_hw_bytes) // 128 * 128)
        hw_tile = int(min(rows, hwp_full))
    else:
        hw_tile = max(128, _round_up(int(hw_tile), 128))
        hw_tile = min(hw_tile, hwp_full)
    nt = (hw + hw_tile - 1) // hw_tile
    hwp = nt * hw_tile

    # Keep NCHW: (B, C, H, W) -> (B, C, H*W) is a free reshape (no HBM transpose
    # round-trip); the bf16 cast is the only elementwise pass over the features.
    feats = features_nchw.reshape(B, C, hw).astype(feat_dtype)
    if hwp != hw:
        feats = jnp.pad(feats, ((0, 0), (0, 0), (0, hwp - hw)))

    meta = _compute_meta(rois, spatial_scale, H, W, rp)           # (rp, 8) sublane-oriented
    lsel = jnp.zeros((8, rp), jnp.float32)                        # lane-oriented ROI table
    lsel = lsel.at[0, :].set(meta[:, 0])                          # batch index
    lsel = lsel.at[1, :].set(meta[:, 6])                          # keep
    lsel = lsel.at[2, :].set(meta[:, 5])                          # 1/count

    hw_idx = jnp.arange(hwp, dtype=jnp.int32)
    coords = jnp.stack([(hw_idx // W).astype(jnp.float32),
                        (hw_idx % W).astype(jnp.float32)], axis=0)  # (2, hwp)

    w1 = w1.astype(jnp.float32)
    w1a_t = jnp.transpose(w1[:C])                                 # (hidden, C) region half
    w1b_t = jnp.transpose(w1[C:])                                 # (hidden, C) context half
    b1_col = b1.reshape(hidden, 1).astype(jnp.float32)
    w2_row = w2.reshape(hidden, 1).T.astype(jnp.float32)          # (1, hidden)
    b2_2d = b2.reshape(1, 1).astype(jnp.float32)

    kernel = functools.partial(_carn_kernel, inv_hw=1.0 / float(hw), bpad=bpad)

    grid_spec = pltpu.PrefetchScalarGridSpec(
        num_scalar_prefetch=0,
        grid=(nt, B),                                             # tile outer, image inner
        in_specs=[
            pl.BlockSpec((rp, 8), lambda t, b: (0, 0)),            # roi meta (for mask build)
            pl.BlockSpec((8, rp), lambda t, b: (0, 0)),            # roi select/scale (lane-oriented)
            pl.BlockSpec((2, hw_tile), lambda t, b: (0, t)),       # (h, w) coords of tile
            pl.BlockSpec((1, C, hw_tile), lambda t, b: (b, 0, t)), # feature tile (hw minor)
            pl.BlockSpec((hidden, C), lambda t, b: (0, 0)),        # W1[:C]^T
            pl.BlockSpec((hidden, C), lambda t, b: (0, 0)),        # W1[C:]^T
            pl.BlockSpec((hidden, 1), lambda t, b: (0, 0)),        # b1
            pl.BlockSpec((1, hidden), lambda t, b: (0, 0)),        # W2^T
            pl.BlockSpec((1, 1), lambda t, b: (0, 0)),             # b2
        ],
        out_specs=pl.BlockSpec((1, rp), lambda t, b: (0, 0)),
        scratch_shapes=[pltpu.VMEM((rp, hw_tile), feat_dtype),     # cached 0/1 ROI mask
                        pltpu.VMEM((C, rp), jnp.float32),          # region-sum accumulator
                        pltpu.VMEM((C, bpad), jnp.float32)],       # per-image global-sum accum
    )

    # Explicit scoped-VMEM limit from the true (lane-dense) footprint, with headroom,
    # capped well below physical capacity on every generation.
    est = (per_hw_bytes * hw_tile
           + (C * rp + C * bpad) * 4                               # accumulators
           + 2 * (2 * hidden * max(C, 128) * 4 + hidden * 128 * 4) # weight blocks
           + 4 * (1 << 20))                                        # misc margin
    vmem_limit = int(min(cap * 3 // 4, max(int(est * 1.5), 32 * (1 << 20))))

    out = pl.pallas_call(
        kernel,
        out_shape=jax.ShapeDtypeStruct((1, rp), jnp.float32),
        grid_spec=grid_spec,
        compiler_params=pltpu.CompilerParams(
            dimension_semantics=("arbitrary", "arbitrary"),
            vmem_limit_bytes=vmem_limit),
    )(meta, lsel, coords, feats, w1a_t, w1b_t, b1_col, w2_row, b2_2d)
    return out[:, :num_rois]


def _reference_forward(features_nchw, rois, w1, b1, w2, b2, spatial_scale):
    """Pure numpy reference mirroring the PyTorch forward (pooled 1x1)."""
    f = np.asarray(features_nchw, np.float32)
    B, C, H, W = f.shape
    R = rois.shape[0]
    meta = np.asarray(_compute_meta(rois, spatial_scale, H, W, R))
    pooled = np.zeros((R, 2 * C), np.float32)
    for i in range(R):
        b = int(meta[i, 0]); hs = int(meta[i, 1]); he = int(meta[i, 2])
        ws = int(meta[i, 3]); we = int(meta[i, 4]); keep = meta[i, 6]
        if keep <= 0.0:
            continue
        data = f[b]
        pooled[i, :C] = data[:, hs:he, ws:we].mean(axis=(1, 2))
        pooled[i, C:] = data.mean(axis=(1, 2))

    def sp(x):
        return np.where(x > 20.0, x, np.log1p(np.exp(np.minimum(x, 20.0))))

    h1 = sp(pooled @ np.asarray(w1) + np.asarray(b1)[None, :])
    out = sp(h1 @ np.asarray(w2) + np.asarray(b2)[None, :])          # (R, 1)
    return out.T                                                     # (1, R)


if __name__ == "__main__":
    B, C, H, W = 2, 32, 16, 16        # 2C = 64 input channels for the attention MLP
    hidden = 64
    num_rois = 8
    spatial_scale = 0.5

    key = jax.random.PRNGKey(0)
    kf, kb, kxy, kwh, kw1, kb1, kw2, kb2 = jax.random.split(key, 8)

    features = jax.random.normal(kf, (B, C, H, W), jnp.float32)

    batch_idx = jax.random.randint(kb, (num_rois, 1), 0, B).astype(jnp.float32)
    xy1 = jax.random.uniform(kxy, (num_rois, 2), minval=0.0, maxval=20.0)
    wh = jax.random.uniform(kwh, (num_rois, 2), minval=2.0, maxval=14.0)
    xy2 = xy1 + wh
    rois = jnp.concatenate(
        [batch_idx, xy1[:, 0:1], xy1[:, 1:2], xy2[:, 0:1], xy2[:, 1:2]], axis=1)

    # Conv1d k=1 weights stored transposed: (in, out).
    w1 = 0.1 * jax.random.normal(kw1, (2 * C, hidden), jnp.float32)
    b1 = 0.1 * jax.random.normal(kb1, (hidden,), jnp.float32)
    w2 = 0.1 * jax.random.normal(kw2, (hidden, 1), jnp.float32)
    b2 = 0.1 * jax.random.normal(kb2, (1,), jnp.float32)

    ref = _reference_forward(features, rois, w1, b1, w2, b2, spatial_scale)

    # Exact f32 path, auto tile sizing (single spatial tile here): tight tolerance.
    out_f32 = context_aware_regional_attention(
        features, rois, w1, b1, w2, b2, spatial_scale, feat_dtype=jnp.float32)
    out_f32 = jax.block_until_ready(out_f32)
    assert out_f32.shape == (1, num_rois), out_f32.shape
    assert np.allclose(np.asarray(out_f32), ref, rtol=1e-3, atol=1e-3), (
        np.asarray(out_f32), ref)

    # bf16 streaming path (default), hw_tile=128 -> grid (2 tiles, 2 images):
    # exercises both accumulation axes and the cached-mask rebuild per tile.
    out_bf16 = context_aware_regional_attention(
        features, rois, w1, b1, w2, b2, spatial_scale, hw_tile=128)
    out_bf16 = jax.block_until_ready(out_bf16)
    assert out_bf16.shape == (1, num_rois), out_bf16.shape
    assert np.allclose(np.asarray(out_bf16), ref, rtol=2e-2, atol=2e-2), (
        np.asarray(out_bf16), ref)

    print("KERNEL_OK")
</pallas_src>

<mosaic_0001>
module attributes {stable_mosaic.version = 11 : i64} {
  func.func @_carn_kernel(%arg0: i32, %arg1: i32, %arg2: memref<128x8xf32, #tpu.memory_space<vmem>>, %arg3: memref<8x128xf32, #tpu.memory_space<vmem>>, %arg4: memref<2x256xf32, #tpu.memory_space<vmem>>, %arg5: memref<1x32x256xf32, #tpu.memory_space<vmem>>, %arg6: memref<64x32xf32, #tpu.memory_space<vmem>>, %arg7: memref<64x32xf32, #tpu.memory_space<vmem>>, %arg8: memref<64x1xf32, #tpu.memory_space<vmem>>, %arg9: memref<1x64xf32, #tpu.memory_space<vmem>>, %arg10: memref<1x1xf32, #tpu.memory_space<vmem>>, %arg11: memref<1x128xf32, #tpu.memory_space<vmem>>, %arg12: memref<128x256xf32, #tpu.memory_space<vmem>>, %arg13: memref<32x128xf32, #tpu.memory_space<vmem>>, %arg14: memref<32x128xf32, #tpu.memory_space<vmem>>) attributes {dimension_semantics = [#tpu.dimension_semantics<arbitrary>, #tpu.dimension_semantics<arbitrary>], iteration_bounds = array<i64: 1, 2>, scalar_prefetch = 0 : i64, scratch_operands = 3 : i64, tpu.core_type = #tpu.core_type<tc>, window_params = [{pipeline_mode = #tpu.pipeline_mode<synchronous>, transform_indices = @transform_0, window_bounds = array<i64: 128, 8>}, {pipeline_mode = #tpu.pipeline_mode<synchronous>, transform_indices = @transform_1, window_bounds = array<i64: 8, 128>}, {transform_indices = @transform_2, window_bounds = array<i64: 2, 256>}, {transform_indices = @transform_3, window_bounds = array<i64: 1, 32, 256>}, {pipeline_mode = #tpu.pipeline_mode<synchronous>, transform_indices = @transform_4, window_bounds = array<i64: 64, 32>}, {pipeline_mode = #tpu.pipeline_mode<synchronous>, transform_indices = @transform_5, window_bounds = array<i64: 64, 32>}, {pipeline_mode = #tpu.pipeline_mode<synchronous>, transform_indices = @transform_6, window_bounds = array<i64: 64, 1>}, {pipeline_mode = #tpu.pipeline_mode<synchronous>, transform_indices = @transform_7, window_bounds = array<i64: 1, 64>}, {pipeline_mode = #tpu.pipeline_mode<synchronous>, transform_indices = @transform_8, window_bounds = array<i64: 1, 1>}, {pipeline_mode = #tpu.pipeline_mode<synchronous>, transform_indices = @transform_9, window_bounds = array<i64: 1, 128>}]} {
    %c0_i32 = arith.constant 0 : i32
    %0 = arith.cmpi eq, %arg0, %c0_i32 : i32
    %c0_i32_0 = arith.constant 0 : i32
    %1 = arith.cmpi eq, %arg1, %c0_i32_0 : i32
    %2 = arith.andi %0, %1 : i1
    %c0_i32_1 = arith.constant 0 : i32
    %3 = arith.cmpi eq, %arg0, %c0_i32_1 : i32
    %c1_i32 = arith.constant 1 : i32
    %4 = arith.cmpi eq, %arg1, %c1_i32 : i32
    %5 = arith.andi %3, %4 : i1
    %6 = arith.extui %2 : i1 to i32
    %c0_i32_2 = arith.constant 0 : i32
    %7 = arith.cmpi ne, %6, %c0_i32_2 : i32
    scf.if %7 {
      %cst_23 = arith.constant 0.000000e+00 : f32
      %42 = vector.broadcast %cst_23 : f32 to vector<32x128xf32>
      %c0_24 = arith.constant 0 : index
      %c0_25 = arith.constant 0 : index
      %43 = vector.load %arg13[%c0_24, %c0_25] : memref<32x128xf32, #tpu.memory_space<vmem>>, vector<32x128xf32>
      tpu.vector_store %arg13[%c0_24, %c0_25], %42 {strides = array<i32>} : memref<32x128xf32, #tpu.memory_space<vmem>>, vector<32x128xf32>,
      %cst_26 = arith.constant 0.000000e+00 : f32
      %44 = vector.broadcast %cst_26 : f32 to vector<32x128xf32>
      %c0_27 = arith.constant 0 : index
      %c0_28 = arith.constant 0 : index
      %45 = vector.load %arg14[%c0_27, %c0_28] : memref<32x128xf32, #tpu.memory_space<vmem>>, vector<32x128xf32>
      tpu.vector_store %arg14[%c0_27, %c0_28], %44 {strides = array<i32>} : memref<32x128xf32, #tpu.memory_space<vmem>>, vector<32x128xf32>,
    } else {
    }
    %c0_i32_3 = arith.constant 0 : i32
    %8 = arith.cmpi eq, %arg1, %c0_i32_3 : i32
    %9 = arith.extui %8 : i1 to i32
    %c0_i32_4 = arith.constant 0 : i32
    %10 = arith.cmpi ne, %9, %c0_i32_4 : i32
    scf.if %10 {
      %c0_23 = arith.constant 0 : index
      %c0_24 = arith.constant 0 : index
      %42 = vector.load %arg2[%c0_23, %c0_24] : memref<128x8xf32, #tpu.memory_space<vmem>>, vector<128x8xf32>
      %c0_25 = arith.constant 0 : index
      %c0_26 = arith.constant 0 : index
      %43 = vector.load %arg4[%c0_25, %c0_26] : memref<2x256xf32, #tpu.memory_space<vmem>>, vector<1x256xf32>
      %44 = vector.shape_cast %43 : vector<1x256xf32> to vector<1x256xf32>
      %45 = vector.broadcast %44 : vector<1x256xf32> to vector<128x256xf32>
      %c1_27 = arith.constant 1 : index
      %c0_28 = arith.constant 0 : index
      %46 = vector.load %arg4[%c1_27, %c0_28] : memref<2x256xf32, #tpu.memory_space<vmem>>, vector<1x256xf32>
      %47 = vector.shape_cast %46 : vector<1x256xf32> to vector<1x256xf32>
      %48 = vector.broadcast %47 : vector<1x256xf32> to vector<128x256xf32>
      %49 = vector.extract_strided_slice %42 {offsets = [0, 1], sizes = [128, 1], strides = [1, 1]} : vector<128x8xf32> to vector<128x1xf32>
      %50 = vector.broadcast %49 : vector<128x1xf32> to vector<128x256xf32>
      %51 = arith.cmpf oge, %45, %50 : vector<128x256xf32>
      %52 = vector.extract_strided_slice %42 {offsets = [0, 2], sizes = [128, 1], strides = [1, 1]} : vector<128x8xf32> to vector<128x1xf32>
      %53 = vector.broadcast %52 : vector<128x1xf32> to vector<128x256xf32>
      %54 = arith.cmpf olt, %45, %53 : vector<128x256xf32>
      %55 = arith.andi %51, %54 : vector<128x256xi1>
      %56 = vector.extract_strided_slice %42 {offsets = [0, 3], sizes = [128, 1], strides = [1, 1]} : vector<128x8xf32> to vector<128x1xf32>
      %57 = vector.broadcast %56 : vector<128x1xf32> to vector<128x256xf32>
      %58 = arith.cmpf oge, %48, %57 : vector<128x256xf32>
      %59 = arith.andi %55, %58 : vector<128x256xi1>
      %60 = vector.extract_strided_slice %42 {offsets = [0, 4], sizes = [128, 1], strides = [1, 1]} : vector<128x8xf32> to vector<128x1xf32>
      %61 = vector.broadcast %60 : vector<128x1xf32> to vector<128x256xf32>
      %62 = arith.cmpf olt, %48, %61 : vector<128x256xf32>
      %63 = arith.andi %59, %62 : vector<128x256xi1>
      %cst_29 = arith.constant 1.000000e+00 : f32
      %cst_30 = arith.constant 0.000000e+00 : f32
      %64 = vector.broadcast %cst_29 : f32 to vector<128x256xf32>
      %65 = vector.broadcast %cst_30 : f32 to vector<128x256xf32>
      %66 = arith.select %63, %64, %65 : vector<128x256xi1>, vector<128x256xf32>
      %c0_31 = arith.constant 0 : index
      %c0_32 = arith.constant 0 : index
      %67 = vector.load %arg12[%c0_31, %c0_32] : memref<128x256xf32, #tpu.memory_space<vmem>>, vector<128x256xf32>
      tpu.vector_store %arg12[%c0_31, %c0_32], %66 {strides = array<i32>} : memref<128x256xf32, #tpu.memory_space<vmem>>, vector<128x256xf32>,
    } else {
    }
    %c0 = arith.constant 0 : index
    %c0_5 = arith.constant 0 : index
    %c0_6 = arith.constant 0 : index
    %11 = vector.load %arg5[%c0, %c0_5, %c0_6] : memref<1x32x256xf32, #tpu.memory_space<vmem>>, vector<1x32x256xf32>
    %12 = vector.shape_cast %11 : vector<1x32x256xf32> to vector<32x256xf32>
    %c0_7 = arith.constant 0 : index
    %c0_8 = arith.constant 0 : index
    %13 = vector.load %arg12[%c0_7, %c0_8] : memref<128x256xf32, #tpu.memory_space<vmem>>, vector<128x256xf32>
    %cst = arith.constant dense<0.000000e+00> : vector<32x128xf32>
    %14 = tpu.matmul %12, %13, %cst {dimension_numbers = #tpu.dot_dimension_numbers<[1], [1], [0], [0], [0, 0, 1, 0], [], []>} : vector<32x256xf32>, vector<128x256xf32>, vector<32x128xf32> -> vector<32x128xf32>
    %c0_9 = arith.constant 0 : index
    %c0_10 = arith.constant 0 : index
    %15 = vector.load %arg3[%c0_9, %c0_10] : memref<8x128xf32, #tpu.memory_space<vmem>>, vector<1x128xf32>
    %16 = arith.fptosi %15 : vector<1x128xf32> to vector<1x128xi32>
    %17 = vector.broadcast %arg1 : i32 to vector<1x128xi32>
    %18 = arith.cmpi eq, %16, %17 : vector<1x128xi32>
    %c1 = arith.constant 1 : index
    %c0_11 = arith.constant 0 : index
    %19 = vector.load %arg3[%c1, %c0_11] : memref<8x128xf32, #tpu.memory_space<vmem>>, vector<1x128xf32>
    %cst_12 = arith.constant 0.000000e+00 : f32
    %20 = vector.broadcast %cst_12 : f32 to vector<1x128xf32>
    %21 = arith.select %18, %19, %20 : vector<1x128xi1>, vector<1x128xf32>
    %c0_13 = arith.constant 0 : index
    %c0_14 = arith.constant 0 : index
    %22 = vector.load %arg13[%c0_13, %c0_14] : memref<32x128xf32, #tpu.memory_space<vmem>>, vector<32x128xf32>
    %23 = vector.broadcast %21 : vector<1x128xf32> to vector<32x128xf32>
    %24 = arith.mulf %23, %14 : vector<32x128xf32>
    %25 = arith.addf %22, %24 : vector<32x128xf32>
    %c0_15 = arith.constant 0 : index
    %c0_16 = arith.constant 0 : index
    %26 = vector.load %arg13[%c0_15, %c0_16] : memref<32x128xf32, #tpu.memory_space<vmem>>, vector<32x128xf32>
    tpu.vector_store %arg13[%c0_15, %c0_16], %25 {strides = array<i32>} : memref<32x128xf32, #tpu.memory_space<vmem>>, vector<32x128xf32>,
    %cst_17 = arith.constant dense<0.000000e+00> : vector<32xf32>
    %27 = vector.multi_reduction <add>, %12, %cst_17 [1] : vector<32x256xf32> to vector<32xf32>
    %28 = vector.shape_cast %27 : vector<32xf32> to vector<32x1xf32>
    %29 = tpu.iota {dimensions = array<i32: 1>} : vector<1x128xi32>
    %30 = vector.broadcast %arg1 : i32 to vector<1x128xi32>
    %31 = arith.cmpi eq, %29, %30 : vector<1x128xi32>
    %32 = arith.extui %31 : vector<1x128xi1> to vector<1x128xi32>
    %33 = arith.sitofp %32 : vector<1x128xi32> to vector<1x128xf32>
    %c0_18 = arith.constant 0 : index
    %c0_19 = arith.constant 0 : index
    %34 = vector.load %arg14[%c0_18, %c0_19] : memref<32x128xf32, #tpu.memory_space<vmem>>, vector<32x128xf32>
    %35 = vector.broadcast %28 : vector<32x1xf32> to vector<32x128xf32>
    %36 = vector.broadcast %33 : vector<1x128xf32> to vector<32x128xf32>
    %37 = arith.mulf %35, %36 : vector<32x128xf32>
    %38 = arith.addf %34, %37 : vector<32x128xf32>
    %c0_20 = arith.constant 0 : index
    %c0_21 = arith.constant 0 : index
    %39 = vector.load %arg14[%c0_20, %c0_21] : memref<32x128xf32, #tpu.memory_space<vmem>>, vector<32x128xf32>
    tpu.vector_store %arg14[%c0_20, %c0_21], %38 {strides = array<i32>} : memref<32x128xf32, #tpu.memory_space<vmem>>, vector<32x128xf32>,
    %40 = arith.extui %5 : i1 to i32
    %c0_i32_22 = arith.constant 0 : i32
    %41 = arith.cmpi ne, %40, %c0_i32_22 : i32
    scf.if %41 {
      %c1_23 = arith.constant 1 : index
      %c0_24 = arith.constant 0 : index
      %42 = vector.load %arg3[%c1_23, %c0_24] : memref<8x128xf32, #tpu.memory_space<vmem>>, vector<1x128xf32>
      %c2 = arith.constant 2 : index
      %c0_25 = arith.constant 0 : index
      %43 = vector.load %arg3[%c2, %c0_25] : memref<8x128xf32, #tpu.memory_space<vmem>>, vector<1x128xf32>
      %c0_26 = arith.constant 0 : index
      %c0_27 = arith.constant 0 : index
      %44 = vector.load %arg3[%c0_26, %c0_27] : memref<8x128xf32, #tpu.memory_space<vmem>>, vector<1x128xf32>
      %45 = arith.fptosi %44 : vector<1x128xf32> to vector<1x128xi32>
      %46 = tpu.iota {dimensions = array<i32: 0>} : vector<128x128xi32>
      %47 = vector.broadcast %45 : vector<1x128xi32> to vector<128x128xi32>
      %48 = arith.cmpi eq, %46, %47 : vector<128x128xi32>
      %cst_28 = arith.constant 3.906250e-03 : f32
      %49 = vector.broadcast %cst_28 : f32 to vector<1x128xf32>
      %50 = arith.mulf %42, %49 : vector<1x128xf32>
      %cst_29 = arith.constant 0.000000e+00 : f32
      %51 = vector.shape_cast %50 : vector<1x128xf32> to vector<1x128xf32>
      %52 = vector.broadcast %51 : vector<1x128xf32> to vector<128x128xf32>
      %53 = vector.broadcast %cst_29 : f32 to vector<128x128xf32>
      %54 = arith.select %48, %52, %53 : vector<128x128xi1>, vector<128x128xf32>
      %c0_30 = arith.constant 0 : index
      %c0_31 = arith.constant 0 : index
      %55 = vector.load %arg14[%c0_30, %c0_31] : memref<32x128xf32, #tpu.memory_space<vmem>>, vector<32x128xf32>
      %cst_32 = arith.constant dense<0.000000e+00> : vector<32x128xf32>
      %56 = tpu.matmul %55, %54, %cst_32 {dimension_numbers = #tpu.dot_dimension_numbers<[1], [0], [0], [1], [0, 0, 1, 1], [], []>} : vector<32x128xf32>, vector<128x128xf32>, vector<32x128xf32> -> vector<32x128xf32>
      %c0_33 = arith.constant 0 : index
      %c0_34 = arith.constant 0 : index
      %57 = vector.load %arg13[%c0_33, %c0_34] : memref<32x128xf32, #tpu.memory_space<vmem>>, vector<32x128xf32>
      %58 = vector.broadcast %43 : vector<1x128xf32> to vector<32x128xf32>
      %59 = arith.mulf %57, %58 : vector<32x128xf32>
      %c0_35 = arith.constant 0 : index
      %c0_36 = arith.constant 0 : index
      %60 = vector.load %arg6[%c0_35, %c0_36] : memref<64x32xf32, #tpu.memory_space<vmem>>, vector<64x32xf32>
      %cst_37 = arith.constant dense<0.000000e+00> : vector<64x128xf32>
      %61 = tpu.matmul %60, %59, %cst_37 {dimension_numbers = #tpu.dot_dimension_numbers<[1], [0], [0], [1], [0, 0, 1, 1], [], []>} : vector<64x32xf32>, vector<32x128xf32>, vector<64x128xf32> -> vector<64x128xf32>
      %c0_38 = arith.constant 0 : index
      %c0_39 = arith.constant 0 : index
      %62 = vector.load %arg7[%c0_38, %c0_39] : memref<64x32xf32, #tpu.memory_space<vmem>>, vector<64x32xf32>
      %cst_40 = arith.constant dense<0.000000e+00> : vector<64x128xf32>
      %63 = tpu.matmul %62, %56, %cst_40 {dimension_numbers = #tpu.dot_dimension_numbers<[1], [0], [0], [1], [0, 0, 1, 1], [], []>} : vector<64x32xf32>, vector<32x128xf32>, vector<64x128xf32> -> vector<64x128xf32>
      %64 = arith.addf %61, %63 : vector<64x128xf32>
      %c0_41 = arith.constant 0 : index
      %c0_42 = arith.constant 0 : index
      %65 = vector.load %arg8[%c0_41, %c0_42] : memref<64x1xf32, #tpu.memory_space<vmem>>, vector<64x1xf32>
      %66 = vector.broadcast %65 : vector<64x1xf32> to vector<64x128xf32>
      %67 = arith.addf %64, %66 : vector<64x128xf32>
      %cst_43 = arith.constant 2.000000e+01 : f32
      %68 = vector.broadcast %cst_43 : f32 to vector<64x128xf32>
      %69 = arith.cmpf ogt, %67, %68 : vector<64x128xf32>
      %cst_44 = arith.constant 2.000000e+01 : f32
      %70 = vector.broadcast %cst_44 : f32 to vector<64x128xf32>
      %71 = arith.minimumf %67, %70 : vector<64x128xf32>
      %72 = math.exp %71 : vector<64x128xf32>
      %73 = math.log1p %72 : vector<64x128xf32>
      %74 = arith.select %69, %67, %73 : vector<64x128xi1>, vector<64x128xf32>
      %c0_45 = arith.constant 0 : index
      %c0_46 = arith.constant 0 : index
      %75 = vector.load %arg9[%c0_45, %c0_46] : memref<1x64xf32, #tpu.memory_space<vmem>>, vector<1x64xf32>
      %cst_47 = arith.constant dense<0.000000e+00> : vector<1x128xf32>
      %76 = tpu.matmul %75, %74, %cst_47 {dimension_numbers = #tpu.dot_dimension_numbers<[1], [0], [0], [1], [0, 0, 1, 1], [], []>} : vector<1x64xf32>, vector<64x128xf32>, vector<1x128xf32> -> vector<1x128xf32>
      %c0_48 = arith.constant 0 : index
      %c0_49 = arith.constant 0 : index
      %77 = vector.load %arg10[%c0_48, %c0_49] : memref<1x1xf32, #tpu.memory_space<vmem>>, vector<1x1xf32>
      %78 = vector.broadcast %77 : vector<1x1xf32> to vector<1x128xf32>
      %79 = arith.addf %76, %78 : vector<1x128xf32>
      %cst_50 = arith.constant 2.000000e+01 : f32
      %80 = vector.broadcast %cst_50 : f32 to vector<1x128xf32>
      %81 = arith.cmpf ogt, %79, %80 : vector<1x128xf32>
      %cst_51 = arith.constant 2.000000e+01 : f32
      %82 = vector.broadcast %cst_51 : f32 to vector<1x128xf32>
      %83 = arith.minimumf %79, %82 : vector<1x128xf32>
      %84 = math.exp %83 : vector<1x128xf32>
      %85 = math.log1p %84 : vector<1x128xf32>
      %86 = arith.select %81, %79, %85 : vector<1x128xi1>, vector<1x128xf32>
      %c0_52 = arith.constant 0 : index
      %c0_53 = arith.constant 0 : index
      %87 = vector.load %arg11[%c0_52, %c0_53] : memref<1x128xf32, #tpu.memory_space<vmem>>, vector<1x128xf32>
      tpu.vector_store %arg11[%c0_52, %c0_53], %86 {strides = array<i32>} : memref<1x128xf32, #tpu.memory_space<vmem>>, vector<1x128xf32>,
    } else {
    }
    return
  }
  func.func @transform_0(%arg0: i32, %arg1: i32) -> (i32, i32) {
    %c0_i32 = arith.constant 0 : i32
    %c0_i32_0 = arith.constant 0 : i32
    %c0_i32_1 = arith.constant 0 : i32
    return %c0_i32, %c0_i32_0 : i32, i32
  }
  func.func @transform_1(%arg0: i32, %arg1: i32) -> (i32, i32) {
    %c0_i32 = arith.constant 0 : i32
    %c0_i32_0 = arith.constant 0 : i32
    %c0_i32_1 = arith.constant 0 : i32
    return %c0_i32, %c0_i32_0 : i32, i32
  }
  func.func @transform_2(%arg0: i32, %arg1: i32) -> (i32, i32) {
    %c0_i32 = arith.constant 0 : i32
    %c0_i32_0 = arith.constant 0 : i32
    return %c0_i32, %arg0 : i32, i32
  }
  func.func @transform_3(%arg0: i32, %arg1: i32) -> (i32, i32, i32) {
    %c0_i32 = arith.constant 0 : i32
    %c0_i32_0 = arith.constant 0 : i32
    return %arg1, %c0_i32, %arg0 : i32, i32, i32
  }
  func.func @transform_4(%arg0: i32, %arg1: i32) -> (i32, i32) {
    %c0_i32 = arith.constant 0 : i32
    %c0_i32_0 = arith.constant 0 : i32
    %c0_i32_1 = arith.constant 0 : i32
    return %c0_i32, %c0_i32_0 : i32, i32
  }
  func.func @transform_5(%arg0: i32, %arg1: i32) -> (i32, i32) {
    %c0_i32 = arith.constant 0 : i32
    %c0_i32_0 = arith.constant 0 : i32
    %c0_i32_1 = arith.constant 0 : i32
    return %c0_i32, %c0_i32_0 : i32, i32
  }
  func.func @transform_6(%arg0: i32, %arg1: i32) -> (i32, i32) {
    %c0_i32 = arith.constant 0 : i32
    %c0_i32_0 = arith.constant 0 : i32
    %c0_i32_1 = arith.constant 0 : i32
    return %c0_i32, %c0_i32_0 : i32, i32
  }
  func.func @transform_7(%arg0: i32, %arg1: i32) -> (i32, i32) {
    %c0_i32 = arith.constant 0 : i32
    %c0_i32_0 = arith.constant 0 : i32
    %c0_i32_1 = arith.constant 0 : i32
    return %c0_i32, %c0_i32_0 : i32, i32
  }
  func.func @transform_8(%arg0: i32, %arg1: i32) -> (i32, i32) {
    %c0_i32 = arith.constant 0 : i32
    %c0_i32_0 = arith.constant 0 : i32
    %c0_i32_1 = arith.constant 0 : i32
    return %c0_i32, %c0_i32_0 : i32, i32
  }
  func.func @transform_9(%arg0: i32, %arg1: i32) -> (i32, i32) {
    %c0_i32 = arith.constant 0 : i32
    %c0_i32_0 = arith.constant 0 : i32
    %c0_i32_1 = arith.constant 0 : i32
    return %c0_i32, %c0_i32_0 : i32, i32
  }
}

</mosaic_0001>

<llo_original>
// kernel: tpu_custom_call.1
$region0: #{tpu_custom_call.1}
  #allocation0 [shape = 'u32[]', space=smem, size = 0x4, offset = 0x4, fixed_abs, tag = 'smem constant byte address 0x4 - core index']
  #allocation1 [shape = 'u32[144,128]{1,0:T(1,128)}', space=vmem, size = 0x12000, scoped, tag = 'internal scratch']
  #allocation2 [shape = 'f32[128,256]{1,0:T(8,128)}', space=vmem, size = 0x20000, scoped, tag = 'scratch operand']
  #allocation3 [shape = 'f32[32,128]{1,0:T(8,128)}', space=vmem, size = 0x4000, scoped, tag = 'scratch operand']
  #allocation4 [shape = 'f32[32,128]{1,0:T(8,128)}', space=vmem, size = 0x4000, scoped, tag = 'scratch operand']
  #allocation5 [shape = 'f32[1,1]{1,0:T(1,128)S(1)}', space=vmem, size = 0x200, scoped, tag = 'scoped memory for tpu_custom_call.1']
  %s0 = inlined_call_operand.vmem [shape: f32[128,8], index: 0, kind: input, shape index: {}]
  %s1 = inlined_call_operand.vmem [shape: f32[8,128], index: 1, kind: input, shape index: {}]
  %s2 = inlined_call_operand.vmem [shape: f32[2,256], index: 2, kind: input, shape index: {}]
  %s3 = inlined_call_operand.vmem [shape: f32[2,32,256], index: 3, kind: input, shape index: {}]
  %s4 = inlined_call_operand.vmem [shape: f32[64,32], index: 4, kind: input, shape index: {}]
  %s5 = inlined_call_operand.vmem [shape: f32[64,32], index: 5, kind: input, shape index: {}]
  %s6 = inlined_call_operand.vmem [shape: f32[64,1], index: 6, kind: input, shape index: {}]
  %s7 = inlined_call_operand.vmem [shape: f32[1,64], index: 7, kind: input, shape index: {}]
  %s8 = inlined_call_operand.<no memory space> [shape: f32[1,1], index: 8, kind: input, shape index: {}]
  %s9 = inlined_call_operand.hbm [shape: f32[1,128], index: 9, kind: output, shape index: {}]
  %s10 = sld [smem:[#allocation0]]
  $region81: #{tpu_custom_call.1} parent=0
    _
  %s12 = ssub.s32 1, %s10
  %s13 = scalar_select 0, %s12, %s10
  %v14 = vstv %s8
  %15 = vst [vmem:[#allocation5] sm:$0x1] %v14
  $region1: #{tpu_custom_call.1} parent=0
    #allocation6 [shape = 'u8[512]{0}', space=vmem, size = 0x400, scoped, tag = 'output window, operand 0, single buffered']
    #allocation7 [shape = 's32[2]{0}', space=sflag, size = 0x8, scoped, tag = 'scoped memory for tpu_custom_call.1']
    %16 = vsyncpa [#allocation7], 0
    loop: start=0, step=1, limit=4
    $region2: #{tpu_custom_call.1} parent=1 // loop_pre_header
      _
    $region3: #{tpu_custom_call.1} parent=1 // loop_header
      %s18 = sphi 0, %s22
      %p19 = scmp.ge.s32.totalorder %s18, 4
      %s25 = sphi 0, %s37
      %s26 = sphi 0, %s33
      %s27 = sphi 0, %s25
      %s28 = sphi 0, %s26
      %s29 = sphi 0, %s27
      %s30 = sphi 0, %s28
      %s38 = sphi 0, %s38
      %s40 = sphi 0, %s38
      %s41 = sphi 0, %s40
      %s55 = sphi 0, %s41
      %s59 = sphi 0, %s59
      %s61 = sphi 0, %s59
      %s62 = sphi 0, %s61
      %s76 = sphi 0, %s62
      %s82 = sphi 0, %s84
      %s85 = sphi 0, %s82
      %s86 = sphi 0, %s85
      %s102 = sphi 0, %s86
      %s110 = sphi 0, %s112
      %s113 = sphi 0, %s110
      %s114 = sphi 0, %s113
      %s130 = sphi 0, %s114
      %s134 = sphi 0, %s134
      %s136 = sphi 0, %s134
      %s137 = sphi 0, %s136
      %s151 = sphi 0, %s137
      %s155 = sphi 0, %s155
      %s157 = sphi 0, %s155
      %s158 = sphi 0, %s157
      %s172 = sphi 0, %s158
      %s176 = sphi 0, %s176
      %s178 = sphi 0, %s176
      %s179 = sphi 0, %s178
      %s193 = sphi 0, %s179
      %s197 = sphi 0, %s197
      %s199 = sphi 0, %s197
      %s200 = sphi 0, %s199
      %s214 = sphi 0, %s200
      %s218 = sphi 0, %s218
      %s220 = sphi 0, %s218
      %s221 = sphi 0, %s220
      %s235 = sphi 0, %s221
      %s239 = sphi 0, %s239
      %s241 = sphi 0, %s239
      %s242 = sphi 0, %s241
      %s256 = sphi 0, %s242
    $region4: #{tpu_custom_call.1} parent=1 // loop_header_branch
      %21 = sbr.rel (%p19) target = $region8
    $region5: #{tpu_custom_call.1} parent=1 // loop_body
      %s23 = ssub.s32 %s18, 1
      %s24 = ssub.s32 %s18, 2
      %s31 = sadd.s32 1, %s26
      %p32 = scmp.ge.s32.totalorder %s31, 2
      %s33 = scalar_select %p32, 0, %s31
      %s34 = sadd.s32 1, %s25
      %s35 = scalar_select %p32, %s34, %s25
      %p36 = scmp.ge.s32.totalorder %s35, 1
      %s37 = scalar_select %p36, 0, %s35
      %s39 = sadd.s32 %s38, 1
      %p42 = scmp.eq.s32.totalorder %s18, 1
      %p43 = scmp.ne.s32.totalorder %s38, %s40
      %p44 = scmp.eq.s32.totalorder %s18, 0
      %p45 = por %p43, %p44
      %p46 = scmp.ne.s32.totalorder %s38, %s40
      %p47 = scmp.eq.s32.totalorder %s23, 1
      %p48 = por %p46, %p47
      %p49 = scmp.ne.s32.totalorder %s40, %s41
      %p50 = scmp.eq.s32.totalorder %s23, 0
      %p51 = por %p49, %p50
      %p52 = scmp.ne.s32.totalorder %s40, %s41
      %p53 = scmp.eq.s32.totalorder %s24, 1
      %p54 = por %p52, %p53
      %p56 = scmp.ne.s32.totalorder %s41, %s55
      %p57 = scmp.eq.s32.totalorder %s24, 0
      %p58 = por %p56, %p57
      %s60 = sadd.s32 %s59, 1
      %p63 = scmp.eq.s32.totalorder %s18, 1
      %p64 = scmp.ne.s32.totalorder %s59, %s61
      %p65 = scmp.eq.s32.totalorder %s18, 0
      %p66 = por %p64, %p65
      %p67 = scmp.ne.s32.totalorder %s59, %s61
      %p68 = scmp.eq.s32.totalorder %s23, 1
      %p69 = por %p67, %p68
      %p70 = scmp.ne.s32.totalorder %s61, %s62
      %p71 = scmp.eq.s32.totalorder %s23, 0
      %p72 = por %p70, %p71
      %p73 = scmp.ne.s32.totalorder %s61, %s62
      %p74 = scmp.eq.s32.totalorder %s24, 1
      %p75 = por %p73, %p74
      %p77 = scmp.ne.s32.totalorder %s62, %s76
      %p78 = scmp.eq.s32.totalorder %s24, 0
      %p79 = por %p77, %p78
      %s80 = ssub.s32 %s25, %s37
      %p81 = scmp.eq.s32.totalorder %s80, 0
      %s83 = sadd.s32 %s82, 1
      %s84 = scalar_select %p81, %s82, %s83
      %p87 = pneg %p81
      %p88 = scmp.eq.s32.totalorder %s18, 1
      %p89 = por %p87, %p88
      %p90 = scmp.ne.s32.totalorder %s82, %s85
      %p91 = scmp.eq.s32.totalorder %s18, 0
      %p92 = por %p90, %p91
      %p93 = scmp.ne.s32.totalorder %s82, %s85
      %p94 = scmp.eq.s32.totalorder %s23, 1
      %p95 = por %p93, %p94
      %p96 = scmp.ne.s32.totalorder %s85, %s86
      %p97 = scmp.eq.s32.totalorder %s23, 0
      %p98 = por %p96, %p97
      %p99 = scmp.ne.s32.totalorder %s85, %s86
      %p100 = scmp.eq.s32.totalorder %s24, 1
      %p101 = por %p99, %p100
      %p103 = scmp.ne.s32.totalorder %s86, %s102
      %p104 = scmp.eq.s32.totalorder %s24, 0
      %p105 = por %p103, %p104
      %s106 = ssub.s32 %s26, %s33
      %s107 = ssub.s32 %s25, %s37
      %s108 = sor.u32 %s106, %s107
      %p109 = scmp.eq.s32.totalorder %s108, 0
      %s111 = sadd.s32 %s110, 1
      %s112 = scalar_select %p109, %s110, %s111
      %p115 = pneg %p109
      %p116 = scmp.eq.s32.totalorder %s18, 1
      %p117 = por %p115, %p116
      %p118 = scmp.ne.s32.totalorder %s110, %s113
      %p119 = scmp.eq.s32.totalorder %s18, 0
      %p120 = por %p118, %p119
      %p121 = scmp.ne.s32.totalorder %s110, %s113
      %p122 = scmp.eq.s32.totalorder %s23, 1
      %p123 = por %p121, %p122
      %p124 = scmp.ne.s32.totalorder %s113, %s114
      %p125 = scmp.eq.s32.totalorder %s23, 0
      %p126 = por %p124, %p125
      %p127 = scmp.ne.s32.totalorder %s113, %s114
      %p128 = scmp.eq.s32.totalorder %s24, 1
      %p129 = por %p127, %p128
      %p131 = scmp.ne.s32.totalorder %s114, %s130
      %p132 = scmp.eq.s32.totalorder %s24, 0
      %p133 = por %p131, %p132
      %s135 = sadd.s32 %s134, 1
      %p138 = scmp.eq.s32.totalorder %s18, 1
      %p139 = scmp.ne.s32.totalorder %s134, %s136
      %p140 = scmp.eq.s32.totalorder %s18, 0
      %p141 = por %p139, %p140
      %p142 = scmp.ne.s32.totalorder %s134, %s136
      %p143 = scmp.eq.s32.totalorder %s23, 1
      %p144 = por %p142, %p143
      %p145 = scmp.ne.s32.totalorder %s136, %s137
      %p146 = scmp.eq.s32.totalorder %s23, 0
      %p147 = por %p145, %p146
      %p148 = scmp.ne.s32.totalorder %s136, %s137
      %p149 = scmp.eq.s32.totalorder %s24, 1
      %p150 = por %p148, %p149
      %p152 = scmp.ne.s32.totalorder %s137, %s151
      %p153 = scmp.eq.s32.totalorder %s24, 0
      %p154 = por %p152, %p153
      %s156 = sadd.s32 %s155, 1
      %p159 = scmp.eq.s32.totalorder %s18, 1
      %p160 = scmp.ne.s32.totalorder %s155, %s157
      %p161 = scmp.eq.s32.totalorder %s18, 0
      %p162 = por %p160, %p161
      %p163 = scmp.ne.s32.totalorder %s155, %s157
      %p164 = scmp.eq.s32.totalorder %s23, 1
      %p165 = por %p163, %p164
      %p166 = scmp.ne.s32.totalorder %s157, %s158
      %p167 = scmp.eq.s32.totalorder %s23, 0
      %p168 = por %p166, %p167
      %p169 = scmp.ne.s32.totalorder %s157, %s158
      %p170 = scmp.eq.s32.totalorder %s24, 1
      %p171 = por %p169, %p170
      %p173 = scmp.ne.s32.totalorder %s158, %s172
      %p174 = scmp.eq.s32.totalorder %s24, 0
      %p175 = por %p173, %p174
      %s177 = sadd.s32 %s176, 1
      %p180 = scmp.eq.s32.totalorder %s18, 1
      %p181 = scmp.ne.s32.totalorder %s176, %s178
      %p182 = scmp.eq.s32.totalorder %s18, 0
      %p183 = por %p181, %p182
      %p184 = scmp.ne.s32.totalorder %s176, %s178
      %p185 = scmp.eq.s32.totalorder %s23, 1
      %p186 = por %p184, %p185
      %p187 = scmp.ne.s32.totalorder %s178, %s179
      %p188 = scmp.eq.s32.totalorder %s23, 0
      %p189 = por %p187, %p188
      %p190 = scmp.ne.s32.totalorder %s178, %s179
      %p191 = scmp.eq.s32.totalorder %s24, 1
      %p192 = por %p190, %p191
      %p194 = scmp.ne.s32.totalorder %s179, %s193
      %p195 = scmp.eq.s32.totalorder %s24, 0
      %p196 = por %p194, %p195
      %s198 = sadd.s32 %s197, 1
      %p201 = scmp.eq.s32.totalorder %s18, 1
      %p202 = scmp.ne.s32.totalorder %s197, %s199
      %p203 = scmp.eq.s32.totalorder %s18, 0
      %p204 = por %p202, %p203
      %p205 = scmp.ne.s32.totalorder %s197, %s199
      %p206 = scmp.eq.s32.totalorder %s23, 1
      %p207 = por %p205, %p206
      %p208 = scmp.ne.s32.totalorder %s199, %s200
      %p209 = scmp.eq.s32.totalorder %s23, 0
      %p210 = por %p208, %p209
      %p211 = scmp.ne.s32.totalorder %s199, %s200
      %p212 = scmp.eq.s32.totalorder %s24, 1
      %p213 = por %p211, %p212
      %p215 = scmp.ne.s32.totalorder %s200, %s214
      %p216 = scmp.eq.s32.totalorder %s24, 0
      %p217 = por %p215, %p216
      %s219 = sadd.s32 %s218, 1
      %p222 = scmp.eq.s32.totalorder %s18, 1
      %p223 = scmp.ne.s32.totalorder %s218, %s220
      %p224 = scmp.eq.s32.totalorder %s18, 0
      %p225 = por %p223, %p224
      %p226 = scmp.ne.s32.totalorder %s218, %s220
      %p227 = scmp.eq.s32.totalorder %s23, 1
      %p228 = por %p226, %p227
      %p229 = scmp.ne.s32.totalorder %s220, %s221
      %p230 = scmp.eq.s32.totalorder %s23, 0
      %p231 = por %p229, %p230
      %p232 = scmp.ne.s32.totalorder %s220, %s221
      %p233 = scmp.eq.s32.totalorder %s24, 1
      %p234 = por %p232, %p233
      %p236 = scmp.ne.s32.totalorder %s221, %s235
      %p237 = scmp.eq.s32.totalorder %s24, 0
      %p238 = por %p236, %p237
      %s240 = sadd.s32 %s239, 1
      %p243 = scmp.eq.s32.totalorder %s18, 1
      %p244 = scmp.ne.s32.totalorder %s239, %s241
      %p245 = scmp.eq.s32.totalorder %s18, 0
      %p246 = por %p244, %p245
      %p247 = scmp.ne.s32.totalorder %s239, %s241
      %p248 = scmp.eq.s32.totalorder %s23, 1
      %p249 = por %p247, %p248
      %p250 = scmp.ne.s32.totalorder %s241, %s242
      %p251 = scmp.eq.s32.totalorder %s23, 0
      %p252 = por %p250, %p251
      %p253 = scmp.ne.s32.totalorder %s241, %s242
      %p254 = scmp.eq.s32.totalorder %s24, 1
      %p255 = por %p253, %p254
      %p257 = scmp.ne.s32.totalorder %s242, %s256
      %p258 = scmp.eq.s32.totalorder %s24, 0
      %p259 = por %p257, %p258
      %p260 = scmp.le.s32.totalorder 1, %s18
      %p261 = scmp.lt.s32.totalorder %s18, 3
      %p262 = pnand %p260, %p261
      %p263 = pneg %p262
      // Predicated region
      $region9: #{tpu_custom_call.1} parent=5 // pred_check
        _
      $region10: #{tpu_custom_call.1} parent=5 // pred_check_branch
        %265 = sbr.rel (%p262) target = $region12
      $region11: #{tpu_custom_call.1} parent=5 // pred_region
        %s266 = ssub.s32 %s18, 1
        // Predicated region
        $region13: #{tpu_custom_call.1} parent=11 // pred_check
          %p267 = pneg %p51
        $region14: #{tpu_custom_call.1} parent=11 // pred_check_branch
          %269 = sbr.rel (%p267) target = $region16
        $region15: #{tpu_custom_call.1} parent=11 // pred_region
          _
        $region16: #{tpu_custom_call.1} parent=11 // pred_fallthru
          _
        // Predicated region
        $region17: #{tpu_custom_call.1} parent=11 // pred_check
          %p270 = pneg %p72
        $region18: #{tpu_custom_call.1} parent=11 // pred_check_branch
          %272 = sbr.rel (%p270) target = $region20
        $region19: #{tpu_custom_call.1} parent=11 // pred_region
          _
        $region20: #{tpu_custom_call.1} parent=11 // pred_fallthru
          _
        // Predicated region
        $region21: #{tpu_custom_call.1} parent=11 // pred_check
          %p273 = pneg %p98
        $region22: #{tpu_custom_call.1} parent=11 // pred_check_branch
          %275 = sbr.rel (%p273) target = $region24
        $region23: #{tpu_custom_call.1} parent=11 // pred_region
          %s276 = smul.u32 2, %s27
          %p277 = scmp.lt.s32.totalorder %s276, 1
          %s278 = scalar_select %p277, %s276, 1
          %s279 = smul.addr %s278, 2
          %s280 = scalar_lea.vmem %s2, %s279
          %s281 = smul.u32 2, %s27
        $region24: #{tpu_custom_call.1} parent=11 // pred_fallthru
          _
        // Predicated region
        $region25: #{tpu_custom_call.1} parent=11 // pred_check
          %p282 = pneg %p147
        $region26: #{tpu_custom_call.1} parent=11 // pred_check_branch
          %284 = sbr.rel (%p282) target = $region28
        $region27: #{tpu_custom_call.1} parent=11 // pred_region
          _
        $region28: #{tpu_custom_call.1} parent=11 // pred_fallthru
          _
        // Predicated region
        $region29: #{tpu_custom_call.1} parent=11 // pred_check
          %p285 = pneg %p168
        $region30: #{tpu_custom_call.1} parent=11 // pred_check_branch
          %287 = sbr.rel (%p285) target = $region32
        $region31: #{tpu_custom_call.1} parent=11 // pred_region
          _
        $region32: #{tpu_custom_call.1} parent=11 // pred_fallthru
          _
        // Predicated region
        $region33: #{tpu_custom_call.1} parent=11 // pred_check
          %p288 = pneg %p189
        $region34: #{tpu_custom_call.1} parent=11 // pred_check_branch
          %290 = sbr.rel (%p288) target = $region36
        $region35: #{tpu_custom_call.1} parent=11 // pred_region
          _
        $region36: #{tpu_custom_call.1} parent=11 // pred_fallthru
          _
        // Predicated region
        $region37: #{tpu_custom_call.1} parent=11 // pred_check
          %p291 = pneg %p210
        $region38: #{tpu_custom_call.1} parent=11 // pred_check_branch
          %293 = sbr.rel (%p291) target = $region40
        $region39: #{tpu_custom_call.1} parent=11 // pred_region
          _
        $region40: #{tpu_custom_call.1} parent=11 // pred_fallthru
          _
        // Predicated region
        $region41: #{tpu_custom_call.1} parent=11 // pred_check
          %p294 = pneg %p231
        $region42: #{tpu_custom_call.1} parent=11 // pred_check_branch
          %296 = sbr.rel (%p294) target = $region44
        $region43: #{tpu_custom_call.1} parent=11 // pred_region
          _
        $region44: #{tpu_custom_call.1} parent=11 // pred_fallthru
          _
      $region12: #{tpu_custom_call.1} parent=5 // pred_fallthru
        _
      %p297 = scmp.lt.s32.totalorder %s18, 2
      // Predicated region
      $region45: #{tpu_custom_call.1} parent=5 // pred_check
        %p298 = pneg %p297
      $region46: #{tpu_custom_call.1} parent=5 // pred_check_branch
        %300 = sbr.rel (%p298) target = $region48
      $region47: #{tpu_custom_call.1} parent=5 // pred_region
        // Predicated region
        $region49: #{tpu_custom_call.1} parent=47 // pred_check
          %p301 = pneg %p120
        $region50: #{tpu_custom_call.1} parent=47 // pred_check_branch
          %303 = sbr.rel (%p301) target = $region52
        $region51: #{tpu_custom_call.1} parent=47 // pred_region
          %s304 = smul.u32 2, %s25
          %p305 = scmp.lt.s32.totalorder %s26, 1
          %s306 = scalar_select %p305, %s26, 1
          %p307 = scmp.lt.s32.totalorder %s304, 1
          %s308 = scalar_select %p307, %s304, 1
          %s309 = smul.addr %s306, 8
          %s310 = sadd.s32 %s308, %s309
          %s311 = smul.addr %s310, 8
          %s312 = scalar_lea.vmem %s3, %s311
          %s313 = smul.u32 2, %s25
        $region52: #{tpu_custom_call.1} parent=47 // pred_fallthru
          _
      $region48: #{tpu_custom_call.1} parent=5 // pred_fallthru
        _
      %p314 = scmp.le.s32.totalorder 1, %s18
      %p315 = scmp.lt.s32.totalorder %s18, 3
      %p316 = pnand %p314, %p315
      %p317 = pneg %p316
      // Predicated region
      $region53: #{tpu_custom_call.1} parent=5 // pred_check
        _
      $region54: #{tpu_custom_call.1} parent=5 // pred_check_branch
        %319 = sbr.rel (%p316) target = $region56
      $region55: #{tpu_custom_call.1} parent=5 // pred_region
        %s320 = ssub.s32 %s18, 1
        %p321 = pneg %p51
        %p322 = pneg %p48
        %p323 = pneg %p72
        %p324 = pneg %p69
        %s325 = smul.u32 2, %s27
        %p326 = scmp.lt.s32.totalorder %s325, 1
        %s327 = scalar_select %p326, %s325, 1
        %s328 = smul.addr %s327, 2
        %s329 = scalar_lea.vmem %s2, %s328
        %p330 = pneg %p98
        %p331 = pneg %p95
        %s332 = smul.u32 2, %s27
        %p333 = scmp.lt.s32.totalorder %s28, 1
        %s334 = scalar_select %p333, %s28, 1
        %p335 = scmp.lt.s32.totalorder %s332, 1
        %s336 = scalar_select %p335, %s332, 1
        %s337 = smul.addr %s334, 8
        %s338 = sadd.s32 %s336, %s337
        %s339 = smul.addr %s338, 8
        %s340 = scalar_lea.vmem %s3, %s339
        %p341 = pneg %p126
        %p342 = pneg %p123
        %p343 = pneg %p147
        %p344 = pneg %p144
        %p345 = pneg %p168
        %p346 = pneg %p165
        %p347 = pneg %p189
        %p348 = pneg %p186
        %p349 = pneg %p210
        %p350 = pneg %p207
        %p351 = pneg %p231
        %p352 = pneg %p228
        %p353 = pneg %p252
        %p354 = pneg %p249
        %s355 = smul.u32 2, %s27
        %p356 = scmp.lt.s32.totalorder %s355, 1
        %s357 = scalar_select %p356, %s355, 1
        %s358 = smul.addr %s357, 2
        %s359 = scalar_lea.vmem %s2, %s358
        %s360 = smul.u32 2, %s27
        %s361 = smul.u32 2, %s27
        %p362 = scmp.lt.s32.totalorder %s28, 1
        %s363 = scalar_select %p362, %s28, 1
        %p364 = scmp.lt.s32.totalorder %s361, 1
        %s365 = scalar_select %p364, %s361, 1
        %s366 = smul.addr %s363, 8
        %s367 = sadd.s32 %s365, %s366
        %s368 = smul.addr %s367, 8
        %s369 = scalar_lea.vmem %s3, %s368
        %s370 = smul.u32 2, %s27
        %p371 = scmp.eq.s32.totalorder %s27, 0
        %p372 = scmp.eq.s32.totalorder %s28, 0
        %p373 = pnand %p371, %p372
        %p374 = pneg %p373
        %p375 = scmp.eq.s32.totalorder %s28, 1
        %p376 = pnand %p371, %p375
        %p377 = pneg %p376
        // Predicated region
        $region57: #{tpu_custom_call.1} parent=55 // pred_check
          _
        $region58: #{tpu_custom_call.1} parent=55 // pred_check_branch
          %379 = sbr.rel (%p373) target = $region60
        $region59: #{tpu_custom_call.1} parent=55 // pred_region
          %380 = vst [vmem:[#allocation3] sm:$0xff] 0.0
          %381 = vst [vmem:[#allocation3 + $0x8] sm:$0xff] 0.0
          %382 = vst [vmem:[#allocation3 + $0x10] sm:$0xff] 0.0
          %383 = vst [vmem:[#allocation3 + $0x18] sm:$0xff] 0.0
          %384 = vst [vmem:[#allocation4] sm:$0xff] 0.0
          %385 = vst [vmem:[#allocation4 + $0x8] sm:$0xff] 0.0
          %386 = vst [vmem:[#allocation4 + $0x10] sm:$0xff] 0.0
          %387 = vst [vmem:[#allocation4 + $0x18] sm:$0xff] 0.0
        $region60: #{tpu_custom_call.1} parent=55 // pred_fallthru
          _
        // Predicated region
        $region61: #{tpu_custom_call.1} parent=55 // pred_check
          %p388 = pneg %p372
        $region62: #{tpu_custom_call.1} parent=55 // pred_check_branch
          %390 = sbr.rel (%p388) target = $region64
        $region63: #{tpu_custom_call.1} parent=55 // pred_region
          %v391 = vld [vmem:[%s0] sm:$0xff]
          %v392 = vld [vmem:[%s0 + $0x8] sm:$0xff]
          %v393 = vld [vmem:[%s0 + $0x10] sm:$0xff]
          %v394 = vld [vmem:[%s0 + $0x18] sm:$0xff]
          %v395 = vld [vmem:[%s0 + $0x20] sm:$0xff]
          %v396 = vld [vmem:[%s0 + $0x28] sm:$0xff]
          %v397 = vld [vmem:[%s0 + $0x30] sm:$0xff]
          %v398 = vld [vmem:[%s0 + $0x38] sm:$0xff]
          %v399 = vld [vmem:[%s0 + $0x40] sm:$0xff]
          %v400 = vld [vmem:[%s0 + $0x48] sm:$0xff]
          %v401 = vld [vmem:[%s0 + $0x50] sm:$0xff]
          %v402 = vld [vmem:[%s0 + $0x58] sm:$0xff]
          %v403 = vld [vmem:[%s0 + $0x60] sm:$0xff]
          %v404 = vld [vmem:[%s0 + $0x68] sm:$0xff]
          %v405 = vld [vmem:[%s0 + $0x70] sm:$0xff]
          %v406 = vld [vmem:[%s0 + $0x78] sm:$0xff]
          %v407 = vld [vmem:[%s359] ss:$2 sm:$0x3]
          %v409 = vlaneseq
          %v410 = vshrl.u32 %v409, 7
          %v411 = vsub.s32 0, %v410
          %v412 = vrot.slane %v407, %v411
          %v413 = vlaneseq
          %v414 = vshrl.u32 %v413, 7
          %v415 = vsub.s32 1, %v414
          %v416 = vrot.slane %v407, %v415
          %s419 = scalar_lea.vmem %s359, 1
          %v420 = vld [vmem:[%s419] ss:$2 sm:$0x3]
          %v422 = vlaneseq
          %v423 = vshrl.u32 %v422, 7
          %v424 = vsub.s32 0, %v423
          %v425 = vrot.slane %v420, %v424
          %v426 = vlaneseq
          %v427 = vshrl.u32 %v426, 7
          %v428 = vsub.s32 1, %v427
          %v429 = vrot.slane %v420, %v428
          %433 = vset.pattern.permute.xlu0 1
          %434 = vperm.xlu0 %433, %v391
          %v435 = vpop.permute.xlu0 %434
          %438 = vset.pattern.permute.xlu0 1
          %439 = vperm.xlu0 %438, %v392
          %v440 = vpop.permute.xlu0 %439
          %443 = vset.pattern.permute.xlu0 1
          %444 = vperm.xlu0 %443, %v393
          %v445 = vpop.permute.xlu0 %444
          %448 = vset.pattern.permute.xlu0 1
          %449 = vperm.xlu0 %448, %v394
          %v450 = vpop.permute.xlu0 %449
          %453 = vset.pattern.permute.xlu0 1
          %454 = vperm.xlu0 %453, %v395
          %v455 = vpop.permute.xlu0 %454
          %458 = vset.pattern.permute.xlu0 1
          %459 = vperm.xlu0 %458, %v396
          %v460 = vpop.permute.xlu0 %459
          %463 = vset.pattern.permute.xlu0 1
          %464 = vperm.xlu0 %463, %v397
          %v465 = vpop.permute.xlu0 %464
          %468 = vset.pattern.permute.xlu0 1
          %469 = vperm.xlu0 %468, %v398
          %v470 = vpop.permute.xlu0 %469
          %473 = vset.pattern.permute.xlu0 1
          %474 = vperm.xlu0 %473, %v399
          %v475 = vpop.permute.xlu0 %474
          %478 = vset.pattern.permute.xlu0 1
          %479 = vperm.xlu0 %478, %v400
          %v480 = vpop.permute.xlu0 %479
          %483 = vset.pattern.permute.xlu0 1
          %484 = vperm.xlu0 %483, %v401
          %v485 = vpop.permute.xlu0 %484
          %488 = vset.pattern.permute.xlu0 1
          %489 = vperm.xlu0 %488, %v402
          %v490 = vpop.permute.xlu0 %489
          %493 = vset.pattern.permute.xlu0 1
          %494 = vperm.xlu0 %493, %v403
          %v495 = vpop.permute.xlu0 %494
          %498 = vset.pattern.permute.xlu0 1
          %499 = vperm.xlu0 %498, %v404
          %v500 = vpop.permute.xlu0 %499
          %503 = vset.pattern.permute.xlu0 1
          %504 = vperm.xlu0 %503, %v405
          %v505 = vpop.permute.xlu0 %504
          %508 = vset.pattern.permute.xlu0 1
          %509 = vperm.xlu0 %508, %v406
          %v510 = vpop.permute.xlu0 %509
          %vm512 = vcmp.ge.f32.partialorder %v412, %v435
          %vm513 = vcmp.ge.f32.partialorder %v416, %v435
          %vm514 = vcmp.ge.f32.partialorder %v412, %v440
          %vm515 = vcmp.ge.f32.partialorder %v416, %v440
          %vm516 = vcmp.ge.f32.partialorder %v412, %v445
          %vm517 = vcmp.ge.f32.partialorder %v416, %v445
          %vm518 = vcmp.ge.f32.partialorder %v412, %v450
          %vm519 = vcmp.ge.f32.partialorder %v416, %v450
          %vm520 = vcmp.ge.f32.partialorder %v412, %v455
          %vm521 = vcmp.ge.f32.partialorder %v416, %v455
          %vm522 = vcmp.ge.f32.partialorder %v412, %v460
          %vm523 = vcmp.ge.f32.partialorder %v416, %v460
          %vm524 = vcmp.ge.f32.partialorder %v412, %v465
          %vm525 = vcmp.ge.f32.partialorder %v416, %v465
          %vm526 = vcmp.ge.f32.partialorder %v412, %v470
          %vm527 = vcmp.ge.f32.partialorder %v416, %v470
          %vm528 = vcmp.ge.f32.partialorder %v412, %v475
          %vm529 = vcmp.ge.f32.partialorder %v416, %v475
          %vm530 = vcmp.ge.f32.partialorder %v412, %v480
          %vm531 = vcmp.ge.f32.partialorder %v416, %v480
          %vm532 = vcmp.ge.f32.partialorder %v412, %v485
          %vm533 = vcmp.ge.f32.partialorder %v416, %v485
          %vm534 = vcmp.ge.f32.partialorder %v412, %v490
          %vm535 = vcmp.ge.f32.partialorder %v416, %v490
          %vm536 = vcmp.ge.f32.partialorder %v412, %v495
          %vm537 = vcmp.ge.f32.partialorder %v416, %v495
          %vm538 = vcmp.ge.f32.partialorder %v412, %v500
          %vm539 = vcmp.ge.f32.partialorder %v416, %v500
          %vm540 = vcmp.ge.f32.partialorder %v412, %v505
          %vm541 = vcmp.ge.f32.partialorder %v416, %v505
          %vm542 = vcmp.ge.f32.partialorder %v412, %v510
          %vm543 = vcmp.ge.f32.partialorder %v416, %v510
          %544 = vset.pattern.permute.xlu0 2
          %545 = vperm.xlu0 %544, %v391
          %v546 = vpop.permute.xlu0 %545
          %548 = vset.pattern.permute.xlu0 2
          %549 = vperm.xlu0 %548, %v392
          %v550 = vpop.permute.xlu0 %549
          %552 = vset.pattern.permute.xlu0 2
          %553 = vperm.xlu0 %552, %v393
          %v554 = vpop.permute.xlu0 %553
          %556 = vset.pattern.permute.xlu0 2
          %557 = vperm.xlu0 %556, %v394
          %v558 = vpop.permute.xlu0 %557
          %560 = vset.pattern.permute.xlu0 2
          %561 = vperm.xlu0 %560, %v395
          %v562 = vpop.permute.xlu0 %561
          %564 = vset.pattern.permute.xlu0 2
          %565 = vperm.xlu0 %564, %v396
          %v566 = vpop.permute.xlu0 %565
          %568 = vset.pattern.permute.xlu0 2
          %569 = vperm.xlu0 %568, %v397
          %v570 = vpop.permute.xlu0 %569
          %572 = vset.pattern.permute.xlu0 2
          %573 = vperm.xlu0 %572, %v398
          %v574 = vpop.permute.xlu0 %573
          %576 = vset.pattern.permute.xlu0 2
          %577 = vperm.xlu0 %576, %v399
          %v578 = vpop.permute.xlu0 %577
          %580 = vset.pattern.permute.xlu0 2
          %581 = vperm.xlu0 %580, %v400
          %v582 = vpop.permute.xlu0 %581
          %584 = vset.pattern.permute.xlu0 2
          %585 = vperm.xlu0 %584, %v401
          %v586 = vpop.permute.xlu0 %585
          %588 = vset.pattern.permute.xlu0 2
          %589 = vperm.xlu0 %588, %v402
          %v590 = vpop.permute.xlu0 %589
          %592 = vset.pattern.permute.xlu0 2
          %593 = vperm.xlu0 %592, %v403
          %v594 = vpop.permute.xlu0 %593
          %596 = vset.pattern.permute.xlu0 2
          %597 = vperm.xlu0 %596, %v404
          %v598 = vpop.permute.xlu0 %597
          %600 = vset.pattern.permute.xlu0 2
          %601 = vperm.xlu0 %600, %v405
          %v602 = vpop.permute.xlu0 %601
          %604 = vset.pattern.permute.xlu0 2
          %605 = vperm.xlu0 %604, %v406
          %v606 = vpop.permute.xlu0 %605
          %vm608 = vcmp.lt.f32.partialorder %v412, %v546
          %vm609 = vcmp.lt.f32.partialorder %v416, %v546
          %vm610 = vcmp.lt.f32.partialorder %v412, %v550
          %vm611 = vcmp.lt.f32.partialorder %v416, %v550
          %vm612 = vcmp.lt.f32.partialorder %v412, %v554
          %vm613 = vcmp.lt.f32.partialorder %v416, %v554
          %vm614 = vcmp.lt.f32.partialorder %v412, %v558
          %vm615 = vcmp.lt.f32.partialorder %v416, %v558
          %vm616 = vcmp.lt.f32.partialorder %v412, %v562
          %vm617 = vcmp.lt.f32.partialorder %v416, %v562
          %vm618 = vcmp.lt.f32.partialorder %v412, %v566
          %vm619 = vcmp.lt.f32.partialorder %v416, %v566
          %vm620 = vcmp.lt.f32.partialorder %v412, %v570
          %vm621 = vcmp.lt.f32.partialorder %v416, %v570
          %vm622 = vcmp.lt.f32.partialorder %v412, %v574
          %vm623 = vcmp.lt.f32.partialorder %v416, %v574
          %vm624 = vcmp.lt.f32.partialorder %v412, %v578
          %vm625 = vcmp.lt.f32.partialorder %v416, %v578
          %vm626 = vcmp.lt.f32.partialorder %v412, %v582
          %vm627 = vcmp.lt.f32.partialorder %v416, %v582
          %vm628 = vcmp.lt.f32.partialorder %v412, %v586
          %vm629 = vcmp.lt.f32.partialorder %v416, %v586
          %vm630 = vcmp.lt.f32.partialorder %v412, %v590
          %vm631 = vcmp.lt.f32.partialorder %v416, %v590
          %vm632 = vcmp.lt.f32.partialorder %v412, %v594
          %vm633 = vcmp.lt.f32.partialorder %v416, %v594
          %vm634 = vcmp.lt.f32.partialorder %v412, %v598
          %vm635 = vcmp.lt.f32.partialorder %v416, %v598
          %vm636 = vcmp.lt.f32.partialorder %v412, %v602
          %vm637 = vcmp.lt.f32.partialorder %v416, %v602
          %vm638 = vcmp.lt.f32.partialorder %v412, %v606
          %vm639 = vcmp.lt.f32.partialorder %v416, %v606
          %vm640 = vmand %vm512, %vm608
          %vm641 = vmand %vm513, %vm609
          %vm642 = vmand %vm514, %vm610
          %vm643 = vmand %vm515, %vm611
          %vm644 = vmand %vm516, %vm612
          %vm645 = vmand %vm517, %vm613
          %vm646 = vmand %vm518, %vm614
          %vm647 = vmand %vm519, %vm615
          %vm648 = vmand %vm520, %vm616
          %vm649 = vmand %vm521, %vm617
          %vm650 = vmand %vm522, %vm618
          %vm651 = vmand %vm523, %vm619
          %vm652 = vmand %vm524, %vm620
          %vm653 = vmand %vm525, %vm621
          %vm654 = vmand %vm526, %vm622
          %vm655 = vmand %vm527, %vm623
          %vm656 = vmand %vm528, %vm624
          %vm657 = vmand %vm529, %vm625
          %vm658 = vmand %vm530, %vm626
          %vm659 = vmand %vm531, %vm627
          %vm660 = vmand %vm532, %vm628
          %vm661 = vmand %vm533, %vm629
          %vm662 = vmand %vm534, %vm630
          %vm663 = vmand %vm535, %vm631
          %vm664 = vmand %vm536, %vm632
          %vm665 = vmand %vm537, %vm633
          %vm666 = vmand %vm538, %vm634
          %vm667 = vmand %vm539, %vm635
          %vm668 = vmand %vm540, %vm636
          %vm669 = vmand %vm541, %vm637
          %vm670 = vmand %vm542, %vm638
          %vm671 = vmand %vm543, %vm639
          %672 = vset.pattern.permute.xlu0 3
          %673 = vperm.xlu0 %672, %v391
          %v674 = vpop.permute.xlu0 %673
          %676 = vset.pattern.permute.xlu0 3
          %677 = vperm.xlu0 %676, %v392
          %v678 = vpop.permute.xlu0 %677
          %680 = vset.pattern.permute.xlu0 3
          %681 = vperm.xlu0 %680, %v393
          %v682 = vpop.permute.xlu0 %681
          %684 = vset.pattern.permute.xlu0 3
          %685 = vperm.xlu0 %684, %v394
          %v686 = vpop.permute.xlu0 %685
          %688 = vset.pattern.permute.xlu0 3
          %689 = vperm.xlu0 %688, %v395
          %v690 = vpop.permute.xlu0 %689
          %692 = vset.pattern.permute.xlu0 3
          %693 = vperm.xlu0 %692, %v396
          %v694 = vpop.permute.xlu0 %693
          %696 = vset.pattern.permute.xlu0 3
          %697 = vperm.xlu0 %696, %v397
          %v698 = vpop.permute.xlu0 %697
          %700 = vset.pattern.permute.xlu0 3
          %701 = vperm.xlu0 %700, %v398
          %v702 = vpop.permute.xlu0 %701
          %704 = vset.pattern.permute.xlu0 3
          %705 = vperm.xlu0 %704, %v399
          %v706 = vpop.permute.xlu0 %705
          %708 = vset.pattern.permute.xlu0 3
          %709 = vperm.xlu0 %708, %v400
          %v710 = vpop.permute.xlu0 %709
          %712 = vset.pattern.permute.xlu0 3
          %713 = vperm.xlu0 %712, %v401
          %v714 = vpop.permute.xlu0 %713
          %716 = vset.pattern.permute.xlu0 3
          %717 = vperm.xlu0 %716, %v402
          %v718 = vpop.permute.xlu0 %717
          %720 = vset.pattern.permute.xlu0 3
          %721 = vperm.xlu0 %720, %v403
          %v722 = vpop.permute.xlu0 %721
          %724 = vset.pattern.permute.xlu0 3
          %725 = vperm.xlu0 %724, %v404
          %v726 = vpop.permute.xlu0 %725
          %728 = vset.pattern.permute.xlu0 3
          %729 = vperm.xlu0 %728, %v405
          %v730 = vpop.permute.xlu0 %729
          %732 = vset.pattern.permute.xlu0 3
          %733 = vperm.xlu0 %732, %v406
          %v734 = vpop.permute.xlu0 %733
          %vm736 = vcmp.ge.f32.partialorder %v425, %v674
          %vm737 = vcmp.ge.f32.partialorder %v429, %v674
          %vm738 = vcmp.ge.f32.partialorder %v425, %v678
          %vm739 = vcmp.ge.f32.partialorder %v429, %v678
          %vm740 = vcmp.ge.f32.partialorder %v425, %v682
          %vm741 = vcmp.ge.f32.partialorder %v429, %v682
          %vm742 = vcmp.ge.f32.partialorder %v425, %v686
          %vm743 = vcmp.ge.f32.partialorder %v429, %v686
          %vm744 = vcmp.ge.f32.partialorder %v425, %v690
          %vm745 = vcmp.ge.f32.partialorder %v429, %v690
          %vm746 = vcmp.ge.f32.partialorder %v425, %v694
          %vm747 = vcmp.ge.f32.partialorder %v429, %v694
          %vm748 = vcmp.ge.f32.partialorder %v425, %v698
          %vm749 = vcmp.ge.f32.partialorder %v429, %v698
          %vm750 = vcmp.ge.f32.partialorder %v425, %v702
          %vm751 = vcmp.ge.f32.partialorder %v429, %v702
          %vm752 = vcmp.ge.f32.partialorder %v425, %v706
          %vm753 = vcmp.ge.f32.partialorder %v429, %v706
          %vm754 = vcmp.ge.f32.partialorder %v425, %v710
          %vm755 = vcmp.ge.f32.partialorder %v429, %v710
          %vm756 = vcmp.ge.f32.partialorder %v425, %v714
          %vm757 = vcmp.ge.f32.partialorder %v429, %v714
          %vm758 = vcmp.ge.f32.partialorder %v425, %v718
          %vm759 = vcmp.ge.f32.partialorder %v429, %v718
          %vm760 = vcmp.ge.f32.partialorder %v425, %v722
          %vm761 = vcmp.ge.f32.partialorder %v429, %v722
          %vm762 = vcmp.ge.f32.partialorder %v425, %v726
          %vm763 = vcmp.ge.f32.partialorder %v429, %v726
          %vm764 = vcmp.ge.f32.partialorder %v425, %v730
          %vm765 = vcmp.ge.f32.partialorder %v429, %v730
          %vm766 = vcmp.ge.f32.partialorder %v425, %v734
          %vm767 = vcmp.ge.f32.partialorder %v429, %v734
          %vm768 = vmand %vm640, %vm736
          %vm769 = vmand %vm641, %vm737
          %vm770 = vmand %vm642, %vm738
          %vm771 = vmand %vm643, %vm739
          %vm772 = vmand %vm644, %vm740
          %vm773 = vmand %vm645, %vm741
          %vm774 = vmand %vm646, %vm742
          %vm775 = vmand %vm647, %vm743
          %vm776 = vmand %vm648, %vm744
          %vm777 = vmand %vm649, %vm745
          %vm778 = vmand %vm650, %vm746
          %vm779 = vmand %vm651, %vm747
          %vm780 = vmand %vm652, %vm748
          %vm781 = vmand %vm653, %vm749
          %vm782 = vmand %vm654, %vm750
          %vm783 = vmand %vm655, %vm751
          %vm784 = vmand %vm656, %vm752
          %vm785 = vmand %vm657, %vm753
          %vm786 = vmand %vm658, %vm754
          %vm787 = vmand %vm659, %vm755
          %vm788 = vmand %vm660, %vm756
          %vm789 = vmand %vm661, %vm757
          %vm790 = vmand %vm662, %vm758
          %vm791 = vmand %vm663, %vm759
          %vm792 = vmand %vm664, %vm760
          %vm793 = vmand %vm665, %vm761
          %vm794 = vmand %vm666, %vm762
          %vm795 = vmand %vm667, %vm763
          %vm796 = vmand %vm668, %vm764
          %vm797 = vmand %vm669, %vm765
          %vm798 = vmand %vm670, %vm766
          %vm799 = vmand %vm671, %vm767
          %800 = vset.pattern.permute.xlu0 4
          %801 = vperm.xlu0 %800, %v391
          %v802 = vpop.permute.xlu0 %801
          %804 = vset.pattern.permute.xlu0 4
          %805 = vperm.xlu0 %804, %v392
          %v806 = vpop.permute.xlu0 %805
          %808 = vset.pattern.permute.xlu0 4
          %809 = vperm.xlu0 %808, %v393
          %v810 = vpop.permute.xlu0 %809
          %812 = vset.pattern.permute.xlu0 4
          %813 = vperm.xlu0 %812, %v394
          %v814 = vpop.permute.xlu0 %813
          %816 = vset.pattern.permute.xlu0 4
          %817 = vperm.xlu0 %816, %v395
          %v818 = vpop.permute.xlu0 %817
          %820 = vset.pattern.permute.xlu0 4
          %821 = vperm.xlu0 %820, %v396
          %v822 = vpop.permute.xlu0 %821
          %824 = vset.pattern.permute.xlu0 4
          %825 = vperm.xlu0 %824, %v397
          %v826 = vpop.permute.xlu0 %825
          %828 = vset.pattern.permute.xlu0 4
          %829 = vperm.xlu0 %828, %v398
          %v830 = vpop.permute.xlu0 %829
          %832 = vset.pattern.permute.xlu0 4
          %833 = vperm.xlu0 %832, %v399
          %v834 = vpop.permute.xlu0 %833
          %836 = vset.pattern.permute.xlu0 4
          %837 = vperm.xlu0 %836, %v400
          %v838 = vpop.permute.xlu0 %837
          %840 = vset.pattern.permute.xlu0 4
          %841 = vperm.xlu0 %840, %v401
          %v842 = vpop.permute.xlu0 %841
          %844 = vset.pattern.permute.xlu0 4
          %845 = vperm.xlu0 %844, %v402
          %v846 = vpop.permute.xlu0 %845
          %848 = vset.pattern.permute.xlu0 4
          %849 = vperm.xlu0 %848, %v403
          %v850 = vpop.permute.xlu0 %849
          %852 = vset.pattern.permute.xlu0 4
          %853 = vperm.xlu0 %852, %v404
          %v854 = vpop.permute.xlu0 %853
          %856 = vset.pattern.permute.xlu0 4
          %857 = vperm.xlu0 %856, %v405
          %v858 = vpop.permute.xlu0 %857
          %860 = vset.pattern.permute.xlu0 4
          %861 = vperm.xlu0 %860, %v406
          %v862 = vpop.permute.xlu0 %861
          %vm864 = vcmp.lt.f32.partialorder %v425, %v802
          %vm865 = vcmp.lt.f32.partialorder %v429, %v802
          %vm866 = vcmp.lt.f32.partialorder %v425, %v806
          %vm867 = vcmp.lt.f32.partialorder %v429, %v806
          %vm868 = vcmp.lt.f32.partialorder %v425, %v810
          %vm869 = vcmp.lt.f32.partialorder %v429, %v810
          %vm870 = vcmp.lt.f32.partialorder %v425, %v814
          %vm871 = vcmp.lt.f32.partialorder %v429, %v814
          %vm872 = vcmp.lt.f32.partialorder %v425, %v818
          %vm873 = vcmp.lt.f32.partialorder %v429, %v818
          %vm874 = vcmp.lt.f32.partialorder %v425, %v822
          %vm875 = vcmp.lt.f32.partialorder %v429, %v822
          %vm876 = vcmp.lt.f32.partialorder %v425, %v826
          %vm877 = vcmp.lt.f32.partialorder %v429, %v826
          %vm878 = vcmp.lt.f32.partialorder %v425, %v830
          %vm879 = vcmp.lt.f32.partialorder %v429, %v830
          %vm880 = vcmp.lt.f32.partialorder %v425, %v834
          %vm881 = vcmp.lt.f32.partialorder %v429, %v834
          %vm882 = vcmp.lt.f32.partialorder %v425, %v838
          %vm883 = vcmp.lt.f32.partialorder %v429, %v838
          %vm884 = vcmp.lt.f32.partialorder %v425, %v842
          %vm885 = vcmp.lt.f32.partialorder %v429, %v842
          %vm886 = vcmp.lt.f32.partialorder %v425, %v846
          %vm887 = vcmp.lt.f32.partialorder %v429, %v846
          %vm888 = vcmp.lt.f32.partialorder %v425, %v850
          %vm889 = vcmp.lt.f32.partialorder %v429, %v850
          %vm890 = vcmp.lt.f32.partialorder %v425, %v854
          %vm891 = vcmp.lt.f32.partialorder %v429, %v854
          %vm892 = vcmp.lt.f32.partialorder %v425, %v858
          %vm893 = vcmp.lt.f32.partialorder %v429, %v858
          %vm894 = vcmp.lt.f32.partialorder %v425, %v862
          %vm895 = vcmp.lt.f32.partialorder %v429, %v862
          %vm896 = vmand %vm768, %vm864
          %vm897 = vmand %vm769, %vm865
          %vm898 = vmand %vm770, %vm866
          %vm899 = vmand %vm771, %vm867
          %vm900 = vmand %vm772, %vm868
          %vm901 = vmand %vm773, %vm869
          %vm902 = vmand %vm774, %vm870
          %vm903 = vmand %vm775, %vm871
          %vm904 = vmand %vm776, %vm872
          %vm905 = vmand %vm777, %vm873
          %vm906 = vmand %vm778, %vm874
          %vm907 = vmand %vm779, %vm875
          %vm908 = vmand %vm780, %vm876
          %vm909 = vmand %vm781, %vm877
          %vm910 = vmand %vm782, %vm878
          %vm911 = vmand %vm783, %vm879
          %vm912 = vmand %vm784, %vm880
          %vm913 = vmand %vm785, %vm881
          %vm914 = vmand %vm786, %vm882
          %vm915 = vmand %vm787, %vm883
          %vm916 = vmand %vm788, %vm884
          %vm917 = vmand %vm789, %vm885
          %vm918 = vmand %vm790, %vm886
          %vm919 = vmand %vm791, %vm887
          %vm920 = vmand %vm792, %vm888
          %vm921 = vmand %vm793, %vm889
          %vm922 = vmand %vm794, %vm890
          %vm923 = vmand %vm795, %vm891
          %vm924 = vmand %vm796, %vm892
          %vm925 = vmand %vm797, %vm893
          %vm926 = vmand %vm798, %vm894
          %vm927 = vmand %vm799, %vm895
          %v928 = vsel %vm896, 1.0, 0.0
          %v929 = vsel %vm897, 1.0, 0.0
          %v930 = vsel %vm898, 1.0, 0.0
          %v931 = vsel %vm899, 1.0, 0.0
          %v932 = vsel %vm900, 1.0, 0.0
          %v933 = vsel %vm901, 1.0, 0.0
          %v934 = vsel %vm902, 1.0, 0.0
          %v935 = vsel %vm903, 1.0, 0.0
          %v936 = vsel %vm904, 1.0, 0.0
          %v937 = vsel %vm905, 1.0, 0.0
          %v938 = vsel %vm906, 1.0, 0.0
          %v939 = vsel %vm907, 1.0, 0.0
          %v940 = vsel %vm908, 1.0, 0.0
          %v941 = vsel %vm909, 1.0, 0.0
          %v942 = vsel %vm910, 1.0, 0.0
          %v943 = vsel %vm911, 1.0, 0.0
          %v944 = vsel %vm912, 1.0, 0.0
          %v945 = vsel %vm913, 1.0, 0.0
          %v946 = vsel %vm914, 1.0, 0.0
          %v947 = vsel %vm915, 1.0, 0.0
          %v948 = vsel %vm916, 1.0, 0.0
          %v949 = vsel %vm917, 1.0, 0.0
          %v950 = vsel %vm918, 1.0, 0.0
          %v951 = vsel %vm919, 1.0, 0.0
          %v952 = vsel %vm920, 1.0, 0.0
          %v953 = vsel %vm921, 1.0, 0.0
          %v954 = vsel %vm922, 1.0, 0.0
          %v955 = vsel %vm923, 1.0, 0.0
          %v956 = vsel %vm924, 1.0, 0.0
          %v957 = vsel %vm925, 1.0, 0.0
          %v958 = vsel %vm926, 1.0, 0.0
          %v959 = vsel %vm927, 1.0, 0.0
          %960 = vst [vmem:[#allocation2] sm:$0xff] %v928
          %961 = vst [vmem:[#allocation2 + $0x8] sm:$0xff] %v929
          %962 = vst [vmem:[#allocation2 + $0x10] sm:$0xff] %v930
          %963 = vst [vmem:[#allocation2 + $0x18] sm:$0xff] %v931
          %964 = vst [vmem:[#allocation2 + $0x20] sm:$0xff] %v932
          %965 = vst [vmem:[#allocation2 + $0x28] sm:$0xff] %v933
          %966 = vst [vmem:[#allocation2 + $0x30] sm:$0xff] %v934
          %967 = vst [vmem:[#allocation2 + $0x38] sm:$0xff] %v935
          %968 = vst [vmem:[#allocation2 + $0x40] sm:$0xff] %v936
          %969 = vst [vmem:[#allocation2 + $0x48] sm:$0xff] %v937
          %970 = vst [vmem:[#allocation2 + $0x50] sm:$0xff] %v938
          %971 = vst [vmem:[#allocation2 + $0x58] sm:$0xff] %v939
          %972 = vst [vmem:[#allocation2 + $0x60] sm:$0xff] %v940
          %973 = vst [vmem:[#allocation2 + $0x68] sm:$0xff] %v941
          %974 = vst [vmem:[#allocation2 + $0x70] sm:$0xff] %v942
          %975 = vst [vmem:[#allocation2 + $0x78] sm:$0xff] %v943
          %976 = vst [vmem:[#allocation2 + $0x80] sm:$0xff] %v944
          %977 = vst [vmem:[#allocation2 + $0x88] sm:$0xff] %v945
          %978 = vst [vmem:[#allocation2 + $0x90] sm:$0xff] %v946
          %979 = vst [vmem:[#allocation2 + $0x98] sm:$0xff] %v947
          %980 = vst [vmem:[#allocation2 + $0xa0] sm:$0xff] %v948
          %981 = vst [vmem:[#allocation2 + $0xa8] sm:$0xff] %v949
          %982 = vst [vmem:[#allocation2 + $0xb0] sm:$0xff] %v950
          %983 = vst [vmem:[#allocation2 + $0xb8] sm:$0xff] %v951
          %984 = vst [vmem:[#allocation2 + $0xc0] sm:$0xff] %v952
          %985 = vst [vmem:[#allocation2 + $0xc8] sm:$0xff] %v953
          %986 = vst [vmem:[#allocation2 + $0xd0] sm:$0xff] %v954
          %987 = vst [vmem:[#allocation2 + $0xd8] sm:$0xff] %v955
          %988 = vst [vmem:[#allocation2 + $0xe0] sm:$0xff] %v956
          %989 = vst [vmem:[#allocation2 + $0xe8] sm:$0xff] %v957
          %990 = vst [vmem:[#allocation2 + $0xf0] sm:$0xff] %v958
          %991 = vst [vmem:[#allocation2 + $0xf8] sm:$0xff] %v959
        $region64: #{tpu_custom_call.1} parent=55 // pred_fallthru
          _
        %v992 = vld [vmem:[%s369] sm:$0xff]
        %v993 = vld [vmem:[%s369 + $0x8] sm:$0xff]
        %v994 = vld [vmem:[%s369 + $0x10] sm:$0xff]
        %v995 = vld [vmem:[%s369 + $0x18] sm:$0xff]
        %v996 = vld [vmem:[%s369 + $0x20] sm:$0xff]
        %v997 = vld [vmem:[%s369 + $0x28] sm:$0xff]
        %v998 = vld [vmem:[%s369 + $0x30] sm:$0xff]
        %v999 = vld [vmem:[%s369 + $0x38] sm:$0xff]
        %v1000 = vld [vmem:[#allocation2] sm:$0xff]
        %v1001 = vld [vmem:[#allocation2 + $0x8] sm:$0xff]
        %v1002 = vld [vmem:[#allocation2 + $0x10] sm:$0xff]
        %v1003 = vld [vmem:[#allocation2 + $0x18] sm:$0xff]
        %v1004 = vld [vmem:[#allocation2 + $0x20] sm:$0xff]
        %v1005 = vld [vmem:[#allocation2 + $0x28] sm:$0xff]
        %v1006 = vld [vmem:[#allocation2 + $0x30] sm:$0xff]
        %v1007 = vld [vmem:[#allocation2 + $0x38] sm:$0xff]
        %v1008 = vld [vmem:[#allocation2 + $0x40] sm:$0xff]
        %v1009 = vld [vmem:[#allocation2 + $0x48] sm:$0xff]
        %v1010 = vld [vmem:[#allocation2 + $0x50] sm:$0xff]
        %v1011 = vld [vmem:[#allocation2 + $0x58] sm:$0xff]
        %v1012 = vld [vmem:[#allocation2 + $0x60] sm:$0xff]
        %v1013 = vld [vmem:[#allocation2 + $0x68] sm:$0xff]
        %v1014 = vld [vmem:[#allocation2 + $0x70] sm:$0xff]
        %v1015 = vld [vmem:[#allocation2 + $0x78] sm:$0xff]
        %v1016 = vld [vmem:[#allocation2 + $0x80] sm:$0xff]
        %v1017 = vld [vmem:[#allocation2 + $0x88] sm:$0xff]
        %v1018 = vld [vmem:[#allocation2 + $0x90] sm:$0xff]
        %v1019 = vld [vmem:[#allocation2 + $0x98] sm:$0xff]
        %v1020 = vld [vmem:[#allocation2 + $0xa0] sm:$0xff]
        %v1021 = vld [vmem:[#allocation2 + $0xa8] sm:$0xff]
        %v1022 = vld [vmem:[#allocation2 + $0xb0] sm:$0xff]
        %v1023 = vld [vmem:[#allocation2 + $0xb8] sm:$0xff]
        %v1024 = vld [vmem:[#allocation2 + $0xc0] sm:$0xff]
        %v1025 = vld [vmem:[#allocation2 + $0xc8] sm:$0xff]
        %v1026 = vld [vmem:[#allocation2 + $0xd0] sm:$0xff]
        %v1027 = vld [vmem:[#allocation2 + $0xd8] sm:$0xff]
        %v1028 = vld [vmem:[#allocation2 + $0xe0] sm:$0xff]
        %v1029 = vld [vmem:[#allocation2 + $0xe8] sm:$0xff]
        %v1030 = vld [vmem:[#allocation2 + $0xf0] sm:$0xff]
        %v1031 = vld [vmem:[#allocation2 + $0xf8] sm:$0xff]
        %1032 = vmatprep.subr.mxu0 %v1031
        %1033 = vmatpush1.xpose.msra.mxu0 %v1030
        %1034 = vmatprep.subr.mxu0 %v1029
        %1035 = vmatpush1.xpose.msra.mxu0 %v1028
        %1036 = vmatprep.subr.mxu0 %v1027
        %1037 = vmatpush1.xpose.msra.mxu0 %v1026
        %1038 = vmatprep.subr.mxu0 %v1025
        %1039 = vmatpush1.xpose.msra.mxu0 %v1024
        %1040 = vmatprep.subr.mxu0 %v1023
        %1041 = vmatpush1.xpose.msra.mxu0 %v1022
        %1042 = vmatprep.subr.mxu0 %v1021
        %1043 = vmatpush1.xpose.msra.mxu0 %v1020
        %1044 = vmatprep.subr.mxu0 %v1019
        %1045 = vmatpush1.xpose.msra.mxu0 %v1018
        %1046 = vmatprep.subr.mxu0 %v1017
        %1047 = vmatpush1.xpose.msra.mxu0 %v1016
        %1048 = vmatprep.subr.mxu0 %v1015
        %1049 = vmatpush1.xpose.msra.mxu0 %v1014
        %1050 = vmatprep.subr.mxu0 %v1013
        %1051 = vmatpush1.xpose.msra.mxu0 %v1012
        %1052 = vmatprep.subr.mxu0 %v1011
        %1053 = vmatpush1.xpose.msra.mxu0 %v1010
        %1054 = vmatprep.subr.mxu0 %v1009
        %1055 = vmatpush1.xpose.msra.mxu0 %v1008
        %1056 = vmatprep.subr.mxu0 %v1007
        %1057 = vmatpush1.xpose.msra.mxu0 %v1006
        %1058 = vmatprep.subr.mxu0 %v1005
        %1059 = vmatpush1.xpose.msra.mxu0 %v1004
        %1060 = vmatprep.subr.mxu0 %v1003
        %1061 = vmatpush1.xpose.msra.mxu0 %v1002
        %1062 = vmatprep.subr.mxu0 %v1001
        %1063 = vmatpush1.xpose.msra.mxu0 %v1000
        %1064 = vmatprep.subr.mxu0 0.0
        %1065 = vmatpush2.xpose.msra.mxu0 0.0
        %1066 = vmatprep.subr.mxu0 0.0
        %1067 = vmatpush2.xpose.msra.mxu0 0.0
        %1068 = vmatprep.subr.mxu0 0.0
        %1069 = vmatpush2.xpose.msra.mxu0 0.0
        %1070 = vmatprep.subr.mxu0 0.0
        %1071 = vmatpush2.xpose.msra.mxu0 0.0
        %1072 = vmatprep.subr.mxu0 0.0
        %1073 = vmatpush2.xpose.msra.mxu0 0.0
        %1074 = vmatprep.subr.mxu0 0.0
        %1075 = vmatpush2.xpose.msra.mxu0 0.0
        %1076 = vmatprep.subr.mxu0 0.0
        %1077 = vmatpush2.xpose.msra.mxu0 0.0
        %1078 = vmatprep.subr.mxu0 0.0
        %1079 = vmatpush2.xpose.msra.mxu0 0.0
        %1080 = vmatprep.subr.mxu0 0.0
        %1081 = vmatpush2.xpose.msra.mxu0 0.0
        %1082 = vmatprep.subr.mxu0 0.0
        %1083 = vmatpush2.xpose.msra.mxu0 0.0
        %1084 = vmatprep.subr.mxu0 0.0
        %1085 = vmatpush2.xpose.msra.mxu0 0.0
        %1086 = vmatprep.subr.mxu0 0.0
        %1087 = vmatpush2.xpose.msra.mxu0 0.0
        %1088 = vmatprep.subr.mxu0 0.0
        %1089 = vmatpush2.xpose.msra.mxu0 0.0
        %1090 = vmatprep.subr.mxu0 0.0
        %1091 = vmatpush2.xpose.msra.mxu0 0.0
        %1092 = vmatprep.subr.mxu0 0.0
        %1093 = vmatpush2.xpose.msra.mxu0 0.0
        %1094 = vmatprep.subr.mxu0 0.0
        %1095 = vmatpush2.xpose.msra.mxu0 0.0
        %1096 = vmatprep.mubr.f32.mxu0 %v993
        %1097 = vmatmul.mubr.f32.gmra.mxu0 %v992
        %v1098 = vpop.f32.mrf.mxu0
        %v1099 = vadd.f32 0.0, %v1098
        %v1100 = vpop.f32.mrf.mxu0
        %1101 = vmatprep.mubr.f32.mxu0 %v995
        %1102 = vmatmul.mubr.f32.gmra.mxu0 %v994
        %v1103 = vpop.f32.mrf.mxu0
        %v1104 = vadd.f32 0.0, %v1103
        %v1105 = vpop.f32.mrf.mxu0
        %1106 = vmatprep.mubr.f32.mxu0 %v997
        %1107 = vmatmul.mubr.f32.gmra.mxu0 %v996
        %v1108 = vpop.f32.mrf.mxu0
        %v1109 = vadd.f32 0.0, %v1108
        %v1110 = vpop.f32.mrf.mxu0
        %1111 = vmatprep.mubr.f32.mxu0 %v999
        %1112 = vmatmul.mubr.f32.gmra.mxu0 %v998
        %v1113 = vpop.f32.mrf.mxu0
        %v1114 = vadd.f32 0.0, %v1113
        %v1115 = vpop.f32.mrf.mxu0
        %1116 = vdwg.mxu0
        %v1117 = vld [vmem:[%s1] sm:$0x1]
        %v1118 = vcvt.f32.s32.to.zero.pseudo %v1117
        %v1119 = vstv %s28
        %vm1120 = vcmp.eq.s32.totalorder %v1118, %v1119
        %v1121 = vld [vmem:[%s1 + $0x1] sm:$0x1]
        %v1122 = vsel %vm1120, %v1121, 0.0
        %v1123 = vld [vmem:[#allocation3] sm:$0xff]
        %v1124 = vld [vmem:[#allocation3 + $0x8] sm:$0xff]
        %v1125 = vld [vmem:[#allocation3 + $0x10] sm:$0xff]
        %v1126 = vld [vmem:[#allocation3 + $0x18] sm:$0xff]
        %v1127 = vlaneseq
        %v1128 = vshrl.u32 %v1127, 7
        %v1129 = vsub.s32 0, %v1128
        %v1130 = vrot.slane %v1122, %v1129
        %v1131 = vmul.f32 %v1130, %v1099
        %v1132 = vmul.f32 %v1130, %v1104
        %v1133 = vmul.f32 %v1130, %v1109
        %v1134 = vmul.f32 %v1130, %v1114
        %v1135 = vadd.f32 %v1123, %v1131
        %v1136 = vadd.f32 %v1124, %v1132
        %v1137 = vadd.f32 %v1125, %v1133
        %v1138 = vadd.f32 %v1126, %v1134
        %1139 = vst [vmem:[#allocation3] sm:$0xff] %v1135
        %1140 = vst [vmem:[#allocation3 + $0x8] sm:$0xff] %v1136
        %1141 = vst [vmem:[#allocation3 + $0x10] sm:$0xff] %v1137
        %1142 = vst [vmem:[#allocation3 + $0x18] sm:$0xff] %v1138
        %v1143 = vadd.f32 %v992, %v993
        %1144 = vadd.xlane.f32.xlu0 %v1143
        %v1145 = vpop.xlane.xlu0 %1144
        %v1146 = vadd.f32 %v994, %v995
        %1147 = vadd.xlane.f32.xlu0 %v1146
        %v1148 = vpop.xlane.xlu0 %1147
        %v1149 = vadd.f32 %v996, %v997
        %1150 = vadd.xlane.f32.xlu0 %v1149
        %v1151 = vpop.xlane.xlu0 %1150
        %v1152 = vadd.f32 %v998, %v999
        %1153 = vadd.xlane.f32.xlu0 %v1152
        %v1154 = vpop.xlane.xlu0 %1153
        %v1155 = vlaneseq
        %v1156 = vand.u32 %v1155, 127
        %vm1157 = vcmp.eq.s32.totalorder %v1156, %v1119
        %v1158 = vsel %vm1157, 1, 0
        %v1159 = vcvt.s32.f32 %v1158
        %v1160 = vld [vmem:[#allocation4] sm:$0xff]
        %v1161 = vld [vmem:[#allocation4 + $0x8] sm:$0xff]
        %v1162 = vld [vmem:[#allocation4 + $0x10] sm:$0xff]
        %v1163 = vld [vmem:[#allocation4 + $0x18] sm:$0xff]
        %v1164 = vmul.f32 %v1145, %v1159
        %v1165 = vmul.f32 %v1148, %v1159
        %v1166 = vmul.f32 %v1151, %v1159
        %v1167 = vmul.f32 %v1154, %v1159
        %v1168 = vadd.f32 %v1160, %v1164
        %v1169 = vadd.f32 %v1161, %v1165
        %v1170 = vadd.f32 %v1162, %v1166
        %v1171 = vadd.f32 %v1163, %v1167
        %1172 = vst [vmem:[#allocation4] sm:$0xff] %v1168
        %1173 = vst [vmem:[#allocation4 + $0x8] sm:$0xff] %v1169
        %1174 = vst [vmem:[#allocation4 + $0x10] sm:$0xff] %v1170
        %1175 = vst [vmem:[#allocation4 + $0x18] sm:$0xff] %v1171
        // Predicated region
        $region65: #{tpu_custom_call.1} parent=55 // pred_check
          _
        $region66: #{tpu_custom_call.1} parent=55 // pred_check_branch
          %1177 = sbr.rel (%p376) target = $region68
        $region67: #{tpu_custom_call.1} parent=55 // pred_region
          %v1178 = vld [vmem:[%s1 + $0x1] sm:$0x1]
          %v1179 = vld [vmem:[%s1 + $0x2] sm:$0x1]
          %v1180 = vld [vmem:[%s1] sm:$0x1]
          %v1181 = vcvt.f32.s32.to.zero.pseudo %v1180
          %v1182 = vlaneseq
          %v1183 = vshrl.u32 %v1182, 7
          %v1184 = vadd.s32 %v1183, 8
          %v1185 = vadd.s32 %v1183, 16
          %v1186 = vadd.s32 %v1183, 24
          %v1187 = vadd.s32 %v1183, 32
          %v1188 = vadd.s32 %v1183, 40
          %v1189 = vadd.s32 %v1183, 48
          %v1190 = vadd.s32 %v1183, 56
          %v1191 = vadd.s32 %v1183, 64
          %v1192 = vadd.s32 %v1183, 72
          %v1193 = vadd.s32 %v1183, 80
          %v1194 = vadd.s32 %v1183, 88
          %v1195 = vadd.s32 %v1183, 96
          %v1196 = vadd.s32 %v1183, 104
          %v1197 = vadd.s32 %v1183, 112
          %v1198 = vadd.s32 %v1183, 120
          %v1199 = vlaneseq
          %v1200 = vshrl.u32 %v1199, 7
          %v1201 = vsub.s32 0, %v1200
          %v1202 = vrot.slane %v1181, %v1201
          %vm1203 = vcmp.eq.s32.totalorder %v1183, %v1202
          %vm1204 = vcmp.eq.s32.totalorder %v1184, %v1202
          %vm1205 = vcmp.eq.s32.totalorder %v1185, %v1202
          %vm1206 = vcmp.eq.s32.totalorder %v1186, %v1202
          %vm1207 = vcmp.eq.s32.totalorder %v1187, %v1202
          %vm1208 = vcmp.eq.s32.totalorder %v1188, %v1202
          %vm1209 = vcmp.eq.s32.totalorder %v1189, %v1202
          %vm1210 = vcmp.eq.s32.totalorder %v1190, %v1202
          %vm1211 = vcmp.eq.s32.totalorder %v1191, %v1202
          %vm1212 = vcmp.eq.s32.totalorder %v1192, %v1202
          %vm1213 = vcmp.eq.s32.totalorder %v1193, %v1202
          %vm1214 = vcmp.eq.s32.totalorder %v1194, %v1202
          %vm1215 = vcmp.eq.s32.totalorder %v1195, %v1202
          %vm1216 = vcmp.eq.s32.totalorder %v1196, %v1202
          %vm1217 = vcmp.eq.s32.totalorder %v1197, %v1202
          %vm1218 = vcmp.eq.s32.totalorder %v1198, %v1202
          %v1219 = vmul.f32 %v1178, 0.00390625
          %v1220 = vlaneseq
          %v1221 = vshrl.u32 %v1220, 7
          %v1222 = vsub.s32 0, %v1221
          %v1223 = vrot.slane %v1219, %v1222
          %v1224 = vsel %vm1203, %v1223, 0.0
          %v1225 = vsel %vm1204, %v1223, 0.0
          %v1226 = vsel %vm1205, %v1223, 0.0
          %v1227 = vsel %vm1206, %v1223, 0.0
          %v1228 = vsel %vm1207, %v1223, 0.0
          %v1229 = vsel %vm1208, %v1223, 0.0
          %v1230 = vsel %vm1209, %v1223, 0.0
          %v1231 = vsel %vm1210, %v1223, 0.0
          %v1232 = vsel %vm1211, %v1223, 0.0
          %v1233 = vsel %vm1212, %v1223, 0.0
          %v1234 = vsel %vm1213, %v1223, 0.0
          %v1235 = vsel %vm1214, %v1223, 0.0
          %v1236 = vsel %vm1215, %v1223, 0.0
          %v1237 = vsel %vm1216, %v1223, 0.0
          %v1238 = vsel %vm1217, %v1223, 0.0
          %v1239 = vsel %vm1218, %v1223, 0.0
          %v1240 = vld [vmem:[#allocation4] sm:$0xff]
          %v1241 = vld [vmem:[#allocation4 + $0x8] sm:$0xff]
          %v1242 = vld [vmem:[#allocation4 + $0x10] sm:$0xff]
          %v1243 = vld [vmem:[#allocation4 + $0x18] sm:$0xff]
          %1244 = vmatprep.subr.mxu0 0.0
          %1245 = vmatpush1.msra.mxu0 %v1239
          %1246 = vmatprep.subr.mxu0 0.0
          %1247 = vmatpush1.msra.mxu0 %v1238
          %1248 = vmatprep.subr.mxu0 0.0
          %1249 = vmatpush1.msra.mxu0 %v1237
          %1250 = vmatprep.subr.mxu0 0.0
          %1251 = vmatpush1.msra.mxu0 %v1236
          %1252 = vmatprep.subr.mxu0 0.0
          %1253 = vmatpush1.msra.mxu0 %v1235
          %1254 = vmatprep.subr.mxu0 0.0
          %1255 = vmatpush1.msra.mxu0 %v1234
          %1256 = vmatprep.subr.mxu0 0.0
          %1257 = vmatpush1.msra.mxu0 %v1233
          %1258 = vmatprep.subr.mxu0 0.0
          %1259 = vmatpush1.msra.mxu0 %v1232
          %1260 = vmatprep.subr.mxu0 0.0
          %1261 = vmatpush1.msra.mxu0 %v1231
          %1262 = vmatprep.subr.mxu0 0.0
          %1263 = vmatpush1.msra.mxu0 %v1230
          %1264 = vmatprep.subr.mxu0 0.0
          %1265 = vmatpush1.msra.mxu0 %v1229
          %1266 = vmatprep.subr.mxu0 0.0
          %1267 = vmatpush1.msra.mxu0 %v1228
          %1268 = vmatprep.subr.mxu0 0.0
          %1269 = vmatpush1.msra.mxu0 %v1227
          %1270 = vmatprep.subr.mxu0 0.0
          %1271 = vmatpush1.msra.mxu0 %v1226
          %1272 = vmatprep.subr.mxu0 0.0
          %1273 = vmatpush1.msra.mxu0 %v1225
          %1274 = vmatprep.subr.mxu0 0.0
          %1275 = vmatpush1.msra.mxu0 %v1224
          %1276 = vmatprep.subr.mxu0 0.0
          %1277 = vmatpush2.msra.mxu0 0.0
          %1278 = vmatprep.subr.mxu0 0.0
          %1279 = vmatpush2.msra.mxu0 0.0
          %1280 = vmatprep.subr.mxu0 0.0
          %1281 = vmatpush2.msra.mxu0 0.0
          %1282 = vmatprep.subr.mxu0 0.0
          %1283 = vmatpush2.msra.mxu0 0.0
          %1284 = vmatprep.subr.mxu0 0.0
          %1285 = vmatpush2.msra.mxu0 0.0
          %1286 = vmatprep.subr.mxu0 0.0
          %1287 = vmatpush2.msra.mxu0 0.0
          %1288 = vmatprep.subr.mxu0 0.0
          %1289 = vmatpush2.msra.mxu0 0.0
          %1290 = vmatprep.subr.mxu0 0.0
          %1291 = vmatpush2.msra.mxu0 0.0
          %1292 = vmatprep.subr.mxu0 0.0
          %1293 = vmatpush2.msra.mxu0 0.0
          %1294 = vmatprep.subr.mxu0 0.0
          %1295 = vmatpush2.msra.mxu0 0.0
          %1296 = vmatprep.subr.mxu0 0.0
          %1297 = vmatpush2.msra.mxu0 0.0
          %1298 = vmatprep.subr.mxu0 0.0
          %1299 = vmatpush2.msra.mxu0 0.0
          %1300 = vmatprep.subr.mxu0 0.0
          %1301 = vmatpush2.msra.mxu0 0.0
          %1302 = vmatprep.subr.mxu0 0.0
          %1303 = vmatpush2.msra.mxu0 0.0
          %1304 = vmatprep.subr.mxu0 0.0
          %1305 = vmatpush2.msra.mxu0 0.0
          %1306 = vmatprep.subr.mxu0 0.0
          %1307 = vmatpush2.msra.mxu0 0.0
          %1308 = vmatprep.mubr.f32.mxu0 0.0
          %1309 = vmatmul.mubr.f32.gmra.mxu0 %v1240
          %v1310 = vpop.f32.mrf.mxu0
          %v1311 = vadd.f32 0.0, %v1310
          %v1312 = vpop.f32.mrf.mxu0
          %1313 = vmatprep.mubr.f32.mxu0 0.0
          %1314 = vmatmul.mubr.f32.gmra.mxu0 %v1241
          %v1315 = vpop.f32.mrf.mxu0
          %v1316 = vadd.f32 0.0, %v1315
          %v1317 = vpop.f32.mrf.mxu0
          %1318 = vmatprep.mubr.f32.mxu0 0.0
          %1319 = vmatmul.mubr.f32.gmra.mxu0 %v1242
          %v1320 = vpop.f32.mrf.mxu0
          %v1321 = vadd.f32 0.0, %v1320
          %v1322 = vpop.f32.mrf.mxu0
          %1323 = vmatprep.mubr.f32.mxu0 0.0
          %1324 = vmatmul.mubr.f32.gmra.mxu0 %v1243
          %v1325 = vpop.f32.mrf.mxu0
          %v1326 = vadd.f32 0.0, %v1325
          %v1327 = vpop.f32.mrf.mxu0
          %1328 = vdwg.mxu0
          %v1329 = vld [vmem:[#allocation3] sm:$0xff]
          %v1330 = vld [vmem:[#allocation3 + $0x8] sm:$0xff]
          %v1331 = vld [vmem:[#allocation3 + $0x10] sm:$0xff]
          %v1332 = vld [vmem:[#allocation3 + $0x18] sm:$0xff]
          %v1333 = vlaneseq
          %v1334 = vshrl.u32 %v1333, 7
          %v1335 = vsub.s32 0, %v1334
          %v1336 = vrot.slane %v1179, %v1335
          %v1337 = vmul.f32 %v1329, %v1336
          %v1338 = vmul.f32 %v1330, %v1336
          %v1339 = vmul.f32 %v1331, %v1336
          %v1340 = vmul.f32 %v1332, %v1336
          %v1341 = vld [vmem:[%s4] sm:$0xff]
          %v1342 = vld [vmem:[%s4 + $0x8] sm:$0xff]
          %v1343 = vld [vmem:[%s4 + $0x10] sm:$0xff]
          %v1344 = vld [vmem:[%s4 + $0x18] sm:$0xff]
          %v1345 = vld [vmem:[%s4 + $0x20] sm:$0xff]
          %v1346 = vld [vmem:[%s4 + $0x28] sm:$0xff]
          %v1347 = vld [vmem:[%s4 + $0x30] sm:$0xff]
          %v1348 = vld [vmem:[%s4 + $0x38] sm:$0xff]
          %v1349 = vld [vmem:[%s5] sm:$0xff]
          %v1350 = vld [vmem:[%s5 + $0x8] sm:$0xff]
          %v1351 = vld [vmem:[%s5 + $0x10] sm:$0xff]
          %v1352 = vld [vmem:[%s5 + $0x18] sm:$0xff]
          %v1353 = vld [vmem:[%s5 + $0x20] sm:$0xff]
          %v1354 = vld [vmem:[%s5 + $0x28] sm:$0xff]
          %v1355 = vld [vmem:[%s5 + $0x30] sm:$0xff]
          %v1356 = vld [vmem:[%s5 + $0x38] sm:$0xff]
          %vm1357 = vcmask 261120
          %v1359 = vsel %vm1357, %v1349, 0
          %v1362 = vsel %vm1357, %v1350, 0
          %v1365 = vsel %vm1357, %v1351, 0
          %v1368 = vsel %vm1357, %v1352, 0
          %v1371 = vsel %vm1357, %v1353, 0
          %v1374 = vsel %vm1357, %v1354, 0
          %v1377 = vsel %vm1357, %v1355, 0
          %v1380 = vsel %vm1357, %v1356, 0
          %1382 = vmatprep.subr.mxu0 0.0
          %1383 = vmatpush1.msra.mxu0 0.0
          %1384 = vmatprep.subr.mxu0 0.0
          %1385 = vmatpush1.msra.mxu0 0.0
          %1386 = vmatprep.subr.mxu0 0.0
          %1387 = vmatpush1.msra.mxu0 0.0
          %1388 = vmatprep.subr.mxu0 0.0
          %1389 = vmatpush1.msra.mxu0 0.0
          %1390 = vmatprep.subr.mxu0 0.0
          %1391 = vmatpush1.msra.mxu0 0.0
          %1392 = vmatprep.subr.mxu0 0.0
          %1393 = vmatpush1.msra.mxu0 0.0
          %1394 = vmatprep.subr.mxu0 0.0
          %1395 = vmatpush1.msra.mxu0 0.0
          %1396 = vmatprep.subr.mxu0 0.0
          %1397 = vmatpush1.msra.mxu0 0.0
          %1398 = vmatprep.subr.mxu0 0.0
          %1399 = vmatpush1.msra.mxu0 0.0
          %1400 = vmatprep.subr.mxu0 0.0
          %1401 = vmatpush1.msra.mxu0 0.0
          %1402 = vmatprep.subr.mxu0 0.0
          %1403 = vmatpush1.msra.mxu0 0.0
          %1404 = vmatprep.subr.mxu0 0.0
          %1405 = vmatpush1.msra.mxu0 0.0
          %1406 = vmatprep.subr.mxu0 0.0
          %1407 = vmatpush1.msra.mxu0 %v1326
          %1408 = vmatprep.subr.mxu0 0.0
          %1409 = vmatpush1.msra.mxu0 %v1321
          %1410 = vmatprep.subr.mxu0 0.0
          %1411 = vmatpush1.msra.mxu0 %v1316
          %1412 = vmatprep.subr.mxu0 0.0
          %1413 = vmatpush1.msra.mxu0 %v1311
          %1414 = vmatprep.subr.mxu0 0.0
          %1415 = vmatpush2.msra.mxu0 0.0
          %1416 = vmatprep.subr.mxu0 0.0
          %1417 = vmatpush2.msra.mxu0 0.0
          %1418 = vmatprep.subr.mxu0 0.0
          %1419 = vmatpush2.msra.mxu0 0.0
          %1420 = vmatprep.subr.mxu0 0.0
          %1421 = vmatpush2.msra.mxu0 0.0
          %1422 = vmatprep.subr.mxu0 0.0
          %1423 = vmatpush2.msra.mxu0 0.0
          %1424 = vmatprep.subr.mxu0 0.0
          %1425 = vmatpush2.msra.mxu0 0.0
          %1426 = vmatprep.subr.mxu0 0.0
          %1427 = vmatpush2.msra.mxu0 0.0
          %1428 = vmatprep.subr.mxu0 0.0
          %1429 = vmatpush2.msra.mxu0 0.0
          %1430 = vmatprep.subr.mxu0 0.0
          %1431 = vmatpush2.msra.mxu0 0.0
          %1432 = vmatprep.subr.mxu0 0.0
          %1433 = vmatpush2.msra.mxu0 0.0
          %1434 = vmatprep.subr.mxu0 0.0
          %1435 = vmatpush2.msra.mxu0 0.0
          %1436 = vmatprep.subr.mxu0 0.0
          %1437 = vmatpush2.msra.mxu0 0.0
          %1438 = vmatprep.subr.mxu0 0.0
          %1439 = vmatpush2.msra.mxu0 0.0
          %1440 = vmatprep.subr.mxu0 0.0
          %1441 = vmatpush2.msra.mxu0 0.0
          %1442 = vmatprep.subr.mxu0 0.0
          %1443 = vmatpush2.msra.mxu0 0.0
          %1444 = vmatprep.subr.mxu0 0.0
          %1445 = vmatpush2.msra.mxu0 0.0
          %1446 = vmatprep.mubr.f32.mxu0 0.0
          %1447 = vmatmul.mubr.f32.gmra.mxu0 %v1359
          %v1448 = vpop.f32.mrf.mxu0
          %v1449 = vadd.f32 0.0, %v1448
          %v1450 = vpop.f32.mrf.mxu0
          %1451 = vmatprep.mubr.f32.mxu0 0.0
          %1452 = vmatmul.mubr.f32.gmra.mxu0 %v1362
          %v1453 = vpop.f32.mrf.mxu0
          %v1454 = vadd.f32 0.0, %v1453
          %v1455 = vpop.f32.mrf.mxu0
          %1456 = vmatprep.mubr.f32.mxu0 0.0
          %1457 = vmatmul.mubr.f32.gmra.mxu0 %v1365
          %v1458 = vpop.f32.mrf.mxu0
          %v1459 = vadd.f32 0.0, %v1458
          %v1460 = vpop.f32.mrf.mxu0
          %1461 = vmatprep.mubr.f32.mxu0 0.0
          %1462 = vmatmul.mubr.f32.gmra.mxu0 %v1368
          %v1463 = vpop.f32.mrf.mxu0
          %v1464 = vadd.f32 0.0, %v1463
          %v1465 = vpop.f32.mrf.mxu0
          %1466 = vmatprep.mubr.f32.mxu0 0.0
          %1467 = vmatmul.mubr.f32.gmra.mxu0 %v1371
          %v1468 = vpop.f32.mrf.mxu0
          %v1469 = vadd.f32 0.0, %v1468
          %v1470 = vpop.f32.mrf.mxu0
          %1471 = vmatprep.mubr.f32.mxu0 0.0
          %1472 = vmatmul.mubr.f32.gmra.mxu0 %v1374
          %v1473 = vpop.f32.mrf.mxu0
          %v1474 = vadd.f32 0.0, %v1473
          %v1475 = vpop.f32.mrf.mxu0
          %1476 = vmatprep.mubr.f32.mxu0 0.0
          %1477 = vmatmul.mubr.f32.gmra.mxu0 %v1377
          %v1478 = vpop.f32.mrf.mxu0
          %v1479 = vadd.f32 0.0, %v1478
          %v1480 = vpop.f32.mrf.mxu0
          %1481 = vmatprep.mubr.f32.mxu0 0.0
          %1482 = vmatmul.mubr.f32.gmra.mxu0 %v1380
          %v1483 = vpop.f32.mrf.mxu0
          %v1484 = vadd.f32 0.0, %v1483
          %v1485 = vpop.f32.mrf.mxu0
          %1486 = vdwg.mxu0
          %v1488 = vsel %vm1357, %v1341, 0
          %v1491 = vsel %vm1357, %v1342, 0
          %v1494 = vsel %vm1357, %v1343, 0
          %v1497 = vsel %vm1357, %v1344, 0
          %v1500 = vsel %vm1357, %v1345, 0
          %v1503 = vsel %vm1357, %v1346, 0
          %v1506 = vsel %vm1357, %v1347, 0
          %v1509 = vsel %vm1357, %v1348, 0
          %1511 = vmatprep.subr.mxu0 0.0
          %1512 = vmatpush1.msra.mxu0 0.0
          %1513 = vmatprep.subr.mxu0 0.0
          %1514 = vmatpush1.msra.mxu0 0.0
          %1515 = vmatprep.subr.mxu0 0.0
          %1516 = vmatpush1.msra.mxu0 0.0
          %1517 = vmatprep.subr.mxu0 0.0
          %1518 = vmatpush1.msra.mxu0 0.0
          %1519 = vmatprep.subr.mxu0 0.0
          %1520 = vmatpush1.msra.mxu0 0.0
          %1521 = vmatprep.subr.mxu0 0.0
          %1522 = vmatpush1.msra.mxu0 0.0
          %1523 = vmatprep.subr.mxu0 0.0
          %1524 = vmatpush1.msra.mxu0 0.0
          %1525 = vmatprep.subr.mxu0 0.0
          %1526 = vmatpush1.msra.mxu0 0.0
          %1527 = vmatprep.subr.mxu0 0.0
          %1528 = vmatpush1.msra.mxu0 0.0
          %1529 = vmatprep.subr.mxu0 0.0
          %1530 = vmatpush1.msra.mxu0 0.0
          %1531 = vmatprep.subr.mxu0 0.0
          %1532 = vmatpush1.msra.mxu0 0.0
          %1533 = vmatprep.subr.mxu0 0.0
          %1534 = vmatpush1.msra.mxu0 0.0
          %1535 = vmatprep.subr.mxu0 0.0
          %1536 = vmatpush1.msra.mxu0 %v1340
          %1537 = vmatprep.subr.mxu0 0.0
          %1538 = vmatpush1.msra.mxu0 %v1339
          %1539 = vmatprep.subr.mxu0 0.0
          %1540 = vmatpush1.msra.mxu0 %v1338
          %1541 = vmatprep.subr.mxu0 0.0
          %1542 = vmatpush1.msra.mxu0 %v1337
          %1543 = vmatprep.subr.mxu0 0.0
          %1544 = vmatpush2.msra.mxu0 0.0
          %1545 = vmatprep.subr.mxu0 0.0
          %1546 = vmatpush2.msra.mxu0 0.0
          %1547 = vmatprep.subr.mxu0 0.0
          %1548 = vmatpush2.msra.mxu0 0.0
          %1549 = vmatprep.subr.mxu0 0.0
          %1550 = vmatpush2.msra.mxu0 0.0
          %1551 = vmatprep.subr.mxu0 0.0
          %1552 = vmatpush2.msra.mxu0 0.0
          %1553 = vmatprep.subr.mxu0 0.0
          %1554 = vmatpush2.msra.mxu0 0.0
          %1555 = vmatprep.subr.mxu0 0.0
          %1556 = vmatpush2.msra.mxu0 0.0
          %1557 = vmatprep.subr.mxu0 0.0
          %1558 = vmatpush2.msra.mxu0 0.0
          %1559 = vmatprep.subr.mxu0 0.0
          %1560 = vmatpush2.msra.mxu0 0.0
          %1561 = vmatprep.subr.mxu0 0.0
          %1562 = vmatpush2.msra.mxu0 0.0
          %1563 = vmatprep.subr.mxu0 0.0
          %1564 = vmatpush2.msra.mxu0 0.0
          %1565 = vmatprep.subr.mxu0 0.0
          %1566 = vmatpush2.msra.mxu0 0.0
          %1567 = vmatprep.subr.mxu0 0.0
          %1568 = vmatpush2.msra.mxu0 0.0
          %1569 = vmatprep.subr.mxu0 0.0
          %1570 = vmatpush2.msra.mxu0 0.0
          %1571 = vmatprep.subr.mxu0 0.0
          %1572 = vmatpush2.msra.mxu0 0.0
          %1573 = vmatprep.subr.mxu0 0.0
          %1574 = vmatpush2.msra.mxu0 0.0
          %1575 = vmatprep.mubr.f32.mxu0 0.0
          %1576 = vmatmul.mubr.f32.gmra.mxu0 %v1488
          %v1577 = vpop.f32.mrf.mxu0
          %v1578 = vadd.f32 %v1449, %v1577
          %v1579 = vpop.f32.mrf.mxu0
          %1580 = vmatprep.mubr.f32.mxu0 0.0
          %1581 = vmatmul.mubr.f32.gmra.mxu0 %v1491
          %v1582 = vpop.f32.mrf.mxu0
          %v1583 = vadd.f32 %v1454, %v1582
          %v1584 = vpop.f32.mrf.mxu0
          %1585 = vmatprep.mubr.f32.mxu0 0.0
          %1586 = vmatmul.mubr.f32.gmra.mxu0 %v1494
          %v1587 = vpop.f32.mrf.mxu0
          %v1588 = vadd.f32 %v1459, %v1587
          %v1589 = vpop.f32.mrf.mxu0
          %1590 = vmatprep.mubr.f32.mxu0 0.0
          %1591 = vmatmul.mubr.f32.gmra.mxu0 %v1497
          %v1592 = vpop.f32.mrf.mxu0
          %v1593 = vadd.f32 %v1464, %v1592
          %v1594 = vpop.f32.mrf.mxu0
          %1595 = vmatprep.mubr.f32.mxu0 0.0
          %1596 = vmatmul.mubr.f32.gmra.mxu0 %v1500
          %v1597 = vpop.f32.mrf.mxu0
          %v1598 = vadd.f32 %v1469, %v1597
          %v1599 = vpop.f32.mrf.mxu0
          %1600 = vmatprep.mubr.f32.mxu0 0.0
          %1601 = vmatmul.mubr.f32.gmra.mxu0 %v1503
          %v1602 = vpop.f32.mrf.mxu0
          %v1603 = vadd.f32 %v1474, %v1602
          %v1604 = vpop.f32.mrf.mxu0
          %1605 = vmatprep.mubr.f32.mxu0 0.0
          %1606 = vmatmul.mubr.f32.gmra.mxu0 %v1506
          %v1607 = vpop.f32.mrf.mxu0
          %v1608 = vadd.f32 %v1479, %v1607
          %v1609 = vpop.f32.mrf.mxu0
          %1610 = vmatprep.mubr.f32.mxu0 0.0
          %1611 = vmatmul.mubr.f32.gmra.mxu0 %v1509
          %v1612 = vpop.f32.mrf.mxu0
          %v1613 = vadd.f32 %v1484, %v1612
          %v1614 = vpop.f32.mrf.mxu0
          %1615 = vdwg.mxu0
          %v1616 = vld [vmem:[%s6] sm:$0xff]
          %v1617 = vld [vmem:[%s6 + $0x8] sm:$0xff]
          %v1618 = vld [vmem:[%s6 + $0x10] sm:$0xff]
          %v1619 = vld [vmem:[%s6 + $0x18] sm:$0xff]
          %v1620 = vld [vmem:[%s6 + $0x20] sm:$0xff]
          %v1621 = vld [vmem:[%s6 + $0x28] sm:$0xff]
          %v1622 = vld [vmem:[%s6 + $0x30] sm:$0xff]
          %v1623 = vld [vmem:[%s6 + $0x38] sm:$0xff]
          %1625 = vset.pattern.permute.xlu0 0
          %1626 = vperm.xlu0 %1625, %v1616
          %v1627 = vpop.permute.xlu0 %1626
          %1630 = vset.pattern.permute.xlu0 0
          %1631 = vperm.xlu0 %1630, %v1617
          %v1632 = vpop.permute.xlu0 %1631
          %1635 = vset.pattern.permute.xlu0 0
          %1636 = vperm.xlu0 %1635, %v1618
          %v1637 = vpop.permute.xlu0 %1636
          %1640 = vset.pattern.permute.xlu0 0
          %1641 = vperm.xlu0 %1640, %v1619
          %v1642 = vpop.permute.xlu0 %1641
          %1645 = vset.pattern.permute.xlu0 0
          %1646 = vperm.xlu0 %1645, %v1620
          %v1647 = vpop.permute.xlu0 %1646
          %1650 = vset.pattern.permute.xlu0 0
          %1651 = vperm.xlu0 %1650, %v1621
          %v1652 = vpop.permute.xlu0 %1651
          %1655 = vset.pattern.permute.xlu0 0
          %1656 = vperm.xlu0 %1655, %v1622
          %v1657 = vpop.permute.xlu0 %1656
          %1660 = vset.pattern.permute.xlu0 0
          %1661 = vperm.xlu0 %1660, %v1623
          %v1662 = vpop.permute.xlu0 %1661
          %v1664 = vadd.f32 %v1578, %v1627
          %v1665 = vadd.f32 %v1583, %v1632
          %v1666 = vadd.f32 %v1588, %v1637
          %v1667 = vadd.f32 %v1593, %v1642
          %v1668 = vadd.f32 %v1598, %v1647
          %v1669 = vadd.f32 %v1603, %v1652
          %v1670 = vadd.f32 %v1608, %v1657
          %v1671 = vadd.f32 %v1613, %v1662
          %vm1672 = vcmp.gt.f32.partialorder %v1664, 20.0
          %vm1673 = vcmp.gt.f32.partialorder %v1665, 20.0
          %vm1674 = vcmp.gt.f32.partialorder %v1666, 20.0
          %vm1675 = vcmp.gt.f32.partialorder %v1667, 20.0
          %vm1676 = vcmp.gt.f32.partialorder %v1668, 20.0
          %vm1677 = vcmp.gt.f32.partialorder %v1669, 20.0
          %vm1678 = vcmp.gt.f32.partialorder %v1670, 20.0
          %vm1679 = vcmp.gt.f32.partialorder %v1671, 20.0
          %v1680 = vmin.f32 %v1664, 20.0
          %v1681 = vmin.f32 %v1665, 20.0
          %v1682 = vmin.f32 %v1666, 20.0
          %v1683 = vmin.f32 %v1667, 20.0
          %v1684 = vmin.f32 %v1668, 20.0
          %v1685 = vmin.f32 %v1669, 20.0
          %v1686 = vmin.f32 %v1670, 20.0
          %v1687 = vmin.f32 %v1671, 20.0
          %v1688 = vmul.f32 %v1680, 1.442695
          %v1689 = vpow.pop %v1688
          %v1690 = vmul.f32 %v1681, 1.442695
          %v1691 = vpow.pop %v1690
          %v1692 = vmul.f32 %v1682, 1.442695
          %v1693 = vpow.pop %v1692
          %v1694 = vmul.f32 %v1683, 1.442695
          %v1695 = vpow.pop %v1694
          %v1696 = vmul.f32 %v1684, 1.442695
          %v1697 = vpow.pop %v1696
          %v1698 = vmul.f32 %v1685, 1.442695
          %v1699 = vpow.pop %v1698
          %v1700 = vmul.f32 %v1686, 1.442695
          %v1701 = vpow.pop %v1700
          %v1702 = vmul.f32 %v1687, 1.442695
          %v1703 = vpow.pop %v1702
          %v1704 = vadd.f32 %v1689, 1.0
          %v1705 = vlog2.pop %v1704
          %v1706 = vmul.f32 %v1705, 0.6931472
          %v1707 = vmul.f32 -0.5, %v1689
          %v1708 = vadd.f32 %v1707, 1.0
          %v1709 = vmul.f32 %v1708, %v1689
          %v1710 = vand.u32 2147483647, %v1689
          %vm1711 = vcmp.lt.f32.partialorder %v1710, 0.0004427343
          %v1712 = vsel %vm1711, %v1709, %v1706
          %v1713 = vadd.f32 %v1691, 1.0
          %v1714 = vlog2.pop %v1713
          %v1715 = vmul.f32 %v1714, 0.6931472
          %v1716 = vmul.f32 -0.5, %v1691
          %v1717 = vadd.f32 %v1716, 1.0
          %v1718 = vmul.f32 %v1717, %v1691
          %v1719 = vand.u32 2147483647, %v1691
          %vm1720 = vcmp.lt.f32.partialorder %v1719, 0.0004427343
          %v1721 = vsel %vm1720, %v1718, %v1715
          %v1722 = vadd.f32 %v1693, 1.0
          %v1723 = vlog2.pop %v1722
          %v1724 = vmul.f32 %v1723, 0.6931472
          %v1725 = vmul.f32 -0.5, %v1693
          %v1726 = vadd.f32 %v1725, 1.0
          %v1727 = vmul.f32 %v1726, %v1693
          %v1728 = vand.u32 2147483647, %v1693
          %vm1729 = vcmp.lt.f32.partialorder %v1728, 0.0004427343
          %v1730 = vsel %vm1729, %v1727, %v1724
          %v1731 = vadd.f32 %v1695, 1.0
          %v1732 = vlog2.pop %v1731
          %v1733 = vmul.f32 %v1732, 0.6931472
          %v1734 = vmul.f32 -0.5, %v1695
          %v1735 = vadd.f32 %v1734, 1.0
          %v1736 = vmul.f32 %v1735, %v1695
          %v1737 = vand.u32 2147483647, %v1695
          %vm1738 = vcmp.lt.f32.partialorder %v1737, 0.0004427343
          %v1739 = vsel %vm1738, %v1736, %v1733
          %v1740 = vadd.f32 %v1697, 1.0
          %v1741 = vlog2.pop %v1740
          %v1742 = vmul.f32 %v1741, 0.6931472
          %v1743 = vmul.f32 -0.5, %v1697
          %v1744 = vadd.f32 %v1743, 1.0
          %v1745 = vmul.f32 %v1744, %v1697
          %v1746 = vand.u32 2147483647, %v1697
          %vm1747 = vcmp.lt.f32.partialorder %v1746, 0.0004427343
          %v1748 = vsel %vm1747, %v1745, %v1742
          %v1749 = vadd.f32 %v1699, 1.0
          %v1750 = vlog2.pop %v1749
          %v1751 = vmul.f32 %v1750, 0.6931472
          %v1752 = vmul.f32 -0.5, %v1699
          %v1753 = vadd.f32 %v1752, 1.0
          %v1754 = vmul.f32 %v1753, %v1699
          %v1755 = vand.u32 2147483647, %v1699
          %vm1756 = vcmp.lt.f32.partialorder %v1755, 0.0004427343
          %v1757 = vsel %vm1756, %v1754, %v1751
          %v1758 = vadd.f32 %v1701, 1.0
          %v1759 = vlog2.pop %v1758
          %v1760 = vmul.f32 %v1759, 0.6931472
          %v1761 = vmul.f32 -0.5, %v1701
          %v1762 = vadd.f32 %v1761, 1.0
          %v1763 = vmul.f32 %v1762, %v1701
          %v1764 = vand.u32 2147483647, %v1701
          %vm1765 = vcmp.lt.f32.partialorder %v1764, 0.0004427343
          %v1766 = vsel %vm1765, %v1763, %v1760
          %v1767 = vadd.f32 %v1703, 1.0
          %v1768 = vlog2.pop %v1767
          %v1769 = vmul.f32 %v1768, 0.6931472
          %v1770 = vmul.f32 -0.5, %v1703
          %v1771 = vadd.f32 %v1770, 1.0
          %v1772 = vmul.f32 %v1771, %v1703
          %v1773 = vand.u32 2147483647, %v1703
          %vm1774 = vcmp.lt.f32.partialorder %v1773, 0.0004427343
          %v1775 = vsel %vm1774, %v1772, %v1769
          %v1776 = vsel %vm1672, %v1664, %v1712
          %v1777 = vsel %vm1673, %v1665, %v1721
          %v1778 = vsel %vm1674, %v1666, %v1730
          %v1779 = vsel %vm1675, %v1667, %v1739
          %v1780 = vsel %vm1676, %v1668, %v1748
          %v1781 = vsel %vm1677, %v1669, %v1757
          %v1782 = vsel %vm1678, %v1670, %v1766
          %v1783 = vsel %vm1679, %v1671, %v1775
          %v1784 = vld [vmem:[%s7] sm:$0x1]
          %v1785 = vld [vmem:[#allocation5] sm:$0x1]
          %1787 = vset.pattern.permute.xlu0 0
          %1788 = vperm.xlu0 %1787, %v1785
          %v1789 = vpop.permute.xlu0 %1788
          %v1791 = vlaneseq
          %v1792 = vshrl.u32 %v1791, 7
          %v1793 = vsub.s32 0, %v1792
          %v1794 = vrot.slane %v1789, %v1793
          %vm1795 = vcmask 523264
          %v1797 = vsel %vm1795, %v1784, 0
          %1799 = vmatprep.subr.mxu0 0.0
          %1800 = vmatpush1.msra.mxu0 0.0
          %1801 = vmatprep.subr.mxu0 0.0
          %1802 = vmatpush1.msra.mxu0 0.0
          %1803 = vmatprep.subr.mxu0 0.0
          %1804 = vmatpush1.msra.mxu0 0.0
          %1805 = vmatprep.subr.mxu0 0.0
          %1806 = vmatpush1.msra.mxu0 0.0
          %1807 = vmatprep.subr.mxu0 0.0
          %1808 = vmatpush1.msra.mxu0 0.0
          %1809 = vmatprep.subr.mxu0 0.0
          %1810 = vmatpush1.msra.mxu0 0.0
          %1811 = vmatprep.subr.mxu0 0.0
          %1812 = vmatpush1.msra.mxu0 0.0
          %1813 = vmatprep.subr.mxu0 0.0
          %1814 = vmatpush1.msra.mxu0 0.0
          %1815 = vmatprep.subr.mxu0 0.0
          %1816 = vmatpush1.msra.mxu0 %v1783
          %1817 = vmatprep.subr.mxu0 0.0
          %1818 = vmatpush1.msra.mxu0 %v1782
          %1819 = vmatprep.subr.mxu0 0.0
          %1820 = vmatpush1.msra.mxu0 %v1781
          %1821 = vmatprep.subr.mxu0 0.0
          %1822 = vmatpush1.msra.mxu0 %v1780
          %1823 = vmatprep.subr.mxu0 0.0
          %1824 = vmatpush1.msra.mxu0 %v1779
          %1825 = vmatprep.subr.mxu0 0.0
          %1826 = vmatpush1.msra.mxu0 %v1778
          %1827 = vmatprep.subr.mxu0 0.0
          %1828 = vmatpush1.msra.mxu0 %v1777
          %1829 = vmatprep.subr.mxu0 0.0
          %1830 = vmatpush1.msra.mxu0 %v1776
          %1831 = vmatprep.subr.mxu0 0.0
          %1832 = vmatpush2.msra.mxu0 0.0
          %1833 = vmatprep.subr.mxu0 0.0
          %1834 = vmatpush2.msra.mxu0 0.0
          %1835 = vmatprep.subr.mxu0 0.0
          %1836 = vmatpush2.msra.mxu0 0.0
          %1837 = vmatprep.subr.mxu0 0.0
          %1838 = vmatpush2.msra.mxu0 0.0
          %1839 = vmatprep.subr.mxu0 0.0
          %1840 = vmatpush2.msra.mxu0 0.0
          %1841 = vmatprep.subr.mxu0 0.0
          %1842 = vmatpush2.msra.mxu0 0.0
          %1843 = vmatprep.subr.mxu0 0.0
          %1844 = vmatpush2.msra.mxu0 0.0
          %1845 = vmatprep.subr.mxu0 0.0
          %1846 = vmatpush2.msra.mxu0 0.0
          %1847 = vmatprep.subr.mxu0 0.0
          %1848 = vmatpush2.msra.mxu0 0.0
          %1849 = vmatprep.subr.mxu0 0.0
          %1850 = vmatpush2.msra.mxu0 0.0
          %1851 = vmatprep.subr.mxu0 0.0
          %1852 = vmatpush2.msra.mxu0 0.0
          %1853 = vmatprep.subr.mxu0 0.0
          %1854 = vmatpush2.msra.mxu0 0.0
          %1855 = vmatprep.subr.mxu0 0.0
          %1856 = vmatpush2.msra.mxu0 0.0
          %1857 = vmatprep.subr.mxu0 0.0
          %1858 = vmatpush2.msra.mxu0 0.0
          %1859 = vmatprep.subr.mxu0 0.0
          %1860 = vmatpush2.msra.mxu0 0.0
          %1861 = vmatprep.subr.mxu0 0.0
          %1862 = vmatpush2.msra.mxu0 0.0
          %1863 = vmatprep.mubr.f32.mxu0 0.0
          %1864 = vmatmul.mubr.f32.gmra.mxu0 %v1797
          %v1865 = vpop.f32.mrf.mxu0
          %v1866 = vadd.f32 %v1794, %v1865
          %v1867 = vpop.f32.mrf.mxu0
          %1868 = vdwg.mxu0
          %vm1869 = vcmp.gt.f32.partialorder %v1866, 20.0
          %v1870 = vmin.f32 %v1866, 20.0
          %v1871 = vmul.f32 %v1870, 1.442695
          %v1872 = vpow.pop %v1871
          %v1873 = vadd.f32 %v1872, 1.0
          %v1874 = vlog2.pop %v1873
          %v1875 = vmul.f32 %v1874, 0.6931472
          %v1876 = vmul.f32 -0.5, %v1872
          %v1877 = vadd.f32 %v1876, 1.0
          %v1878 = vmul.f32 %v1877, %v1872
          %v1879 = vand.u32 2147483647, %v1872
          %vm1880 = vcmp.lt.f32.partialorder %v1879, 0.0004427343
          %v1881 = vsel %vm1880, %v1878, %v1875
          %v1882 = vsel %vm1869, %v1866, %v1881
          %1883 = vst [vmem:[#allocation6] sm:$0x1] %v1882
        $region68: #{tpu_custom_call.1} parent=55 // pred_fallthru
          _
        // Predicated region
        $region69: #{tpu_custom_call.1} parent=55 // pred_check
          %p1884 = pneg %p249
        $region70: #{tpu_custom_call.1} parent=55 // pred_check_branch
          %1886 = sbr.rel (%p1884) target = $region72
        $region71: #{tpu_custom_call.1} parent=55 // pred_region
          %s1888 = ssub.s32 16, 16
          %1889 = vsyncadd [#allocation7], %s1888
          %s1891 = sshll.u32 [#allocation6], 4
          %s1892 = int_to_ptr.vmem [resolvable:$true] %s1891
          %1894 = dma.vmem_to_hbm [thread:$0]  %s1892, 16, %s9, [#allocation7]
        $region72: #{tpu_custom_call.1} parent=55 // pred_fallthru
          _
        // Predicated region
        $region73: #{tpu_custom_call.1} parent=55 // pred_check
          %p1895 = pneg %p249
        $region74: #{tpu_custom_call.1} parent=55 // pred_check_branch
          %1897 = sbr.rel (%p1895) target = $region76
        $region75: #{tpu_custom_call.1} parent=55 // pred_region
          %1898 = dma.done [#allocation7], 16
        $region76: #{tpu_custom_call.1} parent=55 // pred_fallthru
          _
      $region56: #{tpu_custom_call.1} parent=5 // pred_fallthru
        _
      %p1899 = scmp.le.s32.totalorder 2, %s18
      // Predicated region
      $region77: #{tpu_custom_call.1} parent=5 // pred_check
        %p1900 = pneg %p1899
      $region78: #{tpu_custom_call.1} parent=5 // pred_check_branch
        %1902 = sbr.rel (%p1900) target = $region80
      $region79: #{tpu_custom_call.1} parent=5 // pred_region
        %s1903 = ssub.s32 %s18, 2
      $region80: #{tpu_custom_call.1} parent=5 // pred_fallthru
        _
    $region6: #{tpu_custom_call.1} parent=1 // loop_footer
      %s22 = sadd.s32 1, %s18
    $region7: #{tpu_custom_call.1} parent=1 // loop_footer_branch
      %17 = sbr.rel target = $region3
    $region8: #{tpu_custom_call.1} parent=1 // loop_exit
      _
    %1904 = vsyncpa [#allocation7], 1
    %s1905 = scalar_lea.sflag [#allocation7], 1
    %1906 = vsyncpa %s1905, 1

</llo_original>
